<compile_context>
chip_gen: v7x
topology: tpu7x:2x2x1
jax: 0.10.0
libtpu: 0.0.40
codegen_flags: <defaults>
</compile_context>

<pallas_src>
import jax
import jax.numpy as jnp
from jax.experimental import pallas as pl
from jax.experimental.pallas import tpu as pltpu

_HEAD_PAD = 128  # lane width of each carry / head segment: [residual | forecast]
                 # (do not widen beyond 128 per segment: extra MXU passes on v5e)


def _nhits_kernel(x_ref, w1_ref, b1_ref, w2_ref, b2_ref, w3_ref, b3_ref,
                  wh_ref, bh_ref, out_ref):
    num_blocks = w1_ref.shape[0]
    tile_b = x_ref.shape[0]

    # Fused carry: lanes [0,128) = residual (zero-padded past input_size),
    #              lanes [128,256) = running forecast.
    carry = jnp.concatenate(
        [x_ref[...], jnp.zeros((tile_b, _HEAD_PAD), jnp.float32)], axis=1)

    # Statically unrolled block loop; carry lives in vregs.
    for n in range(num_blocks):
        # fc_stack: 3 x (Linear + ReLU). bf16 in, f32 accumulate on the MXU.
        # w1 is zero-padded to 128 input rows, so feed the lane-aligned
        # residual segment of the carry directly.
        h = jnp.dot(carry[:, :_HEAD_PAD].astype(jnp.bfloat16), w1_ref[n],
                    preferred_element_type=jnp.float32) + b1_ref[n]
        h = jnp.maximum(h, 0.0)
        h = jnp.dot(h.astype(jnp.bfloat16), w2_ref[n],
                    preferred_element_type=jnp.float32) + b2_ref[n]
        h = jnp.maximum(h, 0.0)
        h = jnp.dot(h.astype(jnp.bfloat16), w3_ref[n],
                    preferred_element_type=jnp.float32) + b3_ref[n]
        h = jnp.maximum(h, 0.0)

        # Fused head: one matmul producing [-backcast | forecast] (sign folded
        # into the prepared weights), then a single lane-aligned carry update.
        hf = jnp.dot(h.astype(jnp.bfloat16), wh_ref[n],
                     preferred_element_type=jnp.float32) + bh_ref[n]
        carry = carry + hf

    # Lane-dense writeback of the full 128-lane forecast segment.
    out_ref[...] = carry[:, _HEAD_PAD:]


def prepare_params(params, *, input_size, output_size):
    """One-time parameter preparation (hoisted out of the per-call path)."""
    assert input_size <= _HEAD_PAD and output_size <= _HEAD_PAD
    w1, b1, w2, b2, w3, b3, wb, bb, wf, bf = params
    nb = w1.shape[0]

    # First layer: zero-pad the input dim to the 128-lane residual segment.
    w1p = jnp.pad(w1, ((0, 0), (0, _HEAD_PAD - input_size), (0, 0)))

    # Fused head weights: [-backcast | forecast], each segment zero-padded to
    # 128 lanes so the in-kernel carry update is a single aligned add and the
    # padded residual lanes stay exactly zero.
    wh = jnp.concatenate(
        [jnp.pad(-wb, ((0, 0), (0, 0), (0, _HEAD_PAD - input_size))),
         jnp.pad(wf, ((0, 0), (0, 0), (0, _HEAD_PAD - output_size)))], axis=-1)
    bh = jnp.concatenate(
        [jnp.pad(-bb, ((0, 0), (0, _HEAD_PAD - input_size))),
         jnp.pad(bf, ((0, 0), (0, _HEAD_PAD - output_size)))], axis=-1)

    def wcast(w):  # bf16 weights for the MXU
        return w.astype(jnp.bfloat16)

    def brow(b):   # f32 biases as (nb, 1, out) for clean 2-D broadcast
        return b.reshape(nb, 1, b.shape[-1]).astype(jnp.float32)

    # TODO(synk): biases could be folded into the matmuls (ones column on the
    # LHS / bias row on the weights) to drop 4 VPU adds per block; skipped to
    # keep the carry layout simple -- the VPU is nowhere near saturated here.
    return (wcast(w1p), brow(b1), wcast(w2), brow(b2), wcast(w3), brow(b3),
            wcast(wh), brow(bh))


def nhits_forward(x, prepared, *, input_size, output_size, batch_tile=256):
    """x: [batch, seq, features] float32 -> forecast [batch, output_size]."""
    batch = x.shape[0]

    # Glue (plain JAX): last `input_size` timesteps of feature 0, then pad the
    # batch to a sublane-aligned tile and the lanes to the residual segment.
    x_input = x[:, -input_size:, 0].reshape(batch, input_size).astype(jnp.float32)

    batch8 = ((batch + 7) // 8) * 8
    tile_b = max(8, (min(batch_tile, batch8) // 8) * 8)
    batch_pad = ((batch8 + tile_b - 1) // tile_b) * tile_b
    num_tiles = batch_pad // tile_b
    x_input = jnp.pad(
        x_input, ((0, batch_pad - batch), (0, _HEAD_PAD - input_size)))

    w1, b1, w2, b2, w3, b3, wh, bh = prepared
    nb = w1.shape[0]
    hidden = w2.shape[-1]

    def wspec(arr):  # weights: full block, constant index_map -> VMEM-resident
        return pl.BlockSpec(arr.shape, lambda i: (0, 0, 0))

    grid_spec = pltpu.PrefetchScalarGridSpec(
        num_scalar_prefetch=0,
        grid=(num_tiles,),
        in_specs=[pl.BlockSpec((tile_b, _HEAD_PAD), lambda i: (i, 0))]
                 + [wspec(a) for a in prepared],
        out_specs=pl.BlockSpec((tile_b, _HEAD_PAD), lambda i: (i, 0)),
    )

    flops = int(2 * batch_pad * nb *
                (_HEAD_PAD * hidden + 2 * hidden * hidden + hidden * 2 * _HEAD_PAD))
    bytes_accessed = int(x_input.size * 4
                         + sum(int(a.size) * a.dtype.itemsize for a in prepared)
                         + batch_pad * _HEAD_PAD * 4)

    out = pl.pallas_call(
        _nhits_kernel,
        out_shape=jax.ShapeDtypeStruct((batch_pad, _HEAD_PAD), jnp.float32),
        grid_spec=grid_spec,
        compiler_params=pltpu.CompilerParams(
            dimension_semantics=("parallel",)),
        cost_estimate=pl.CostEstimate(flops=flops, transcendentals=0,
                                      bytes_accessed=bytes_accessed),
    )(x_input, *prepared)
    return out[:batch, :output_size]


def init_params(key, *, input_size, output_size, hidden_size, num_blocks):
    """Deterministic synthetic parameters, stacked over the block axis.
    Weights are stored as (in, out) — i.e. already transposed vs nn.Linear."""
    ks = jax.random.split(key, 10)

    def w(k, shape, fan_in):
        return jax.random.normal(k, shape, jnp.float32) / jnp.sqrt(fan_in)

    w1 = w(ks[0], (num_blocks, input_size, hidden_size), input_size)
    b1 = w(ks[1], (num_blocks, hidden_size), input_size)
    w2 = w(ks[2], (num_blocks, hidden_size, hidden_size), hidden_size)
    b2 = w(ks[3], (num_blocks, hidden_size), hidden_size)
    w3 = w(ks[4], (num_blocks, hidden_size, hidden_size), hidden_size)
    b3 = w(ks[5], (num_blocks, hidden_size), hidden_size)
    wb = w(ks[6], (num_blocks, hidden_size, input_size), hidden_size)
    bb = w(ks[7], (num_blocks, input_size), hidden_size)
    wf = w(ks[8], (num_blocks, hidden_size, output_size), hidden_size)
    bf = w(ks[9], (num_blocks, output_size), hidden_size)
    return (w1, b1, w2, b2, w3, b3, wb, bb, wf, bf)


def nhits_reference(x, params, *, input_size, output_size,
                    matmul_dtype=jnp.float32):
    """Pure-JAX reference mirroring the PyTorch forward.  With
    matmul_dtype=bfloat16 it mirrors the kernel's MXU numerics exactly."""
    w1, b1, w2, b2, w3, b3, wb, bb, wf, bf = params
    batch = x.shape[0]
    residuals = x[:, -input_size:, 0].reshape(batch, -1).astype(jnp.float32)
    forecast = jnp.zeros((batch, output_size), jnp.float32)

    def mm(a, w):
        return jnp.dot(a.astype(matmul_dtype), w.astype(matmul_dtype),
                       preferred_element_type=jnp.float32)

    for n in range(w1.shape[0]):
        h = jax.nn.relu(mm(residuals, w1[n]) + b1[n])
        h = jax.nn.relu(mm(h, w2[n]) + b2[n])
        h = jax.nn.relu(mm(h, w3[n]) + b3[n])
        backcast = mm(h, wb[n]) + bb[n]
        block_forecast = mm(h, wf[n]) + bf[n]
        residuals = residuals - backcast
        forecast = forecast + block_forecast
    return forecast


if __name__ == "__main__":
    batch, seq, feat = 4, 24, 3
    input_size, output_size, hidden_size, num_blocks = 16, 8, 32, 4

    key = jax.random.PRNGKey(0)
    kx, kp = jax.random.split(key)
    x = jax.random.normal(kx, (batch, seq, feat), jnp.float32)
    params = init_params(kp, input_size=input_size, output_size=output_size,
                         hidden_size=hidden_size, num_blocks=num_blocks)

    # One-time (hoisted) parameter preparation.
    prepared = prepare_params(params, input_size=input_size,
                              output_size=output_size)

    out = nhits_forward(x, prepared, input_size=input_size,
                        output_size=output_size)
    out = jax.block_until_ready(out)
    assert out.shape == (batch, output_size)

    # Tight check vs. a reference mirroring the kernel's bf16-matmul numerics.
    ref_bf16 = nhits_reference(x, params, input_size=input_size,
                               output_size=output_size,
                               matmul_dtype=jnp.bfloat16)
    assert jnp.allclose(out, ref_bf16, atol=1e-3, rtol=1e-3), \
        "mismatch vs bf16-mirrored reference"

    # Loose sanity check vs. the full-f32 PyTorch-equivalent forward.
    # (bf16 backcast error compounds over num_blocks; fine at this size.)
    ref_f32 = nhits_reference(x, params, input_size=input_size,
                              output_size=output_size,
                              matmul_dtype=jnp.float32)
    assert jnp.allclose(out, ref_f32, atol=1e-1, rtol=5e-2), \
        "mismatch vs f32 reference"

    print("KERNEL_OK")
</pallas_src>

<mosaic_0001>
module attributes {stable_mosaic.version = 11 : i64} {
  func.func @_nhits_kernel(%arg0: i32, %arg1: memref<8x128xf32, #tpu.memory_space<vmem>>, %arg2: memref<4x128x32xbf16, #tpu.memory_space<vmem>>, %arg3: memref<4x1x32xf32, #tpu.memory_space<vmem>>, %arg4: memref<4x32x32xbf16, #tpu.memory_space<vmem>>, %arg5: memref<4x1x32xf32, #tpu.memory_space<vmem>>, %arg6: memref<4x32x32xbf16, #tpu.memory_space<vmem>>, %arg7: memref<4x1x32xf32, #tpu.memory_space<vmem>>, %arg8: memref<4x32x256xbf16, #tpu.memory_space<vmem>>, %arg9: memref<4x1x256xf32, #tpu.memory_space<vmem>>, %arg10: memref<8x128xf32, #tpu.memory_space<vmem>>) attributes {dimension_semantics = [#tpu.dimension_semantics<parallel>], iteration_bounds = array<i64: 1>, scalar_prefetch = 0 : i64, scratch_operands = 0 : i64, tpu.core_type = #tpu.core_type<tc>, window_params = [{transform_indices = @transform_0, window_bounds = array<i64: 8, 128>}, {pipeline_mode = #tpu.pipeline_mode<synchronous>, transform_indices = @transform_1, window_bounds = array<i64: 4, 128, 32>}, {pipeline_mode = #tpu.pipeline_mode<synchronous>, transform_indices = @transform_2, window_bounds = array<i64: 4, 1, 32>}, {pipeline_mode = #tpu.pipeline_mode<synchronous>, transform_indices = @transform_3, window_bounds = array<i64: 4, 32, 32>}, {pipeline_mode = #tpu.pipeline_mode<synchronous>, transform_indices = @transform_4, window_bounds = array<i64: 4, 1, 32>}, {pipeline_mode = #tpu.pipeline_mode<synchronous>, transform_indices = @transform_5, window_bounds = array<i64: 4, 32, 32>}, {pipeline_mode = #tpu.pipeline_mode<synchronous>, transform_indices = @transform_6, window_bounds = array<i64: 4, 1, 32>}, {pipeline_mode = #tpu.pipeline_mode<synchronous>, transform_indices = @transform_7, window_bounds = array<i64: 4, 32, 256>}, {pipeline_mode = #tpu.pipeline_mode<synchronous>, transform_indices = @transform_8, window_bounds = array<i64: 4, 1, 256>}, {transform_indices = @transform_9, window_bounds = array<i64: 8, 128>}]} {
    %c0 = arith.constant 0 : index
    %c0_0 = arith.constant 0 : index
    %0 = vector.load %arg1[%c0, %c0_0] : memref<8x128xf32, #tpu.memory_space<vmem>>, vector<8x128xf32>
    %cst = arith.constant 0.000000e+00 : f32
    %1 = vector.broadcast %cst : f32 to vector<8x128xf32>
    %2 = tpu.concatenate %0, %1 in 1 : vector<8x128xf32>, vector<8x128xf32> -> vector<8x256xf32>
    %3 = vector.extract_strided_slice %2 {offsets = [0, 0], sizes = [8, 128], strides = [1, 1]} : vector<8x256xf32> to vector<8x128xf32>
    %4 = arith.truncf %3 : vector<8x128xf32> to vector<8x128xbf16>
    %c0_1 = arith.constant 0 : index
    %c0_2 = arith.constant 0 : index
    %c0_3 = arith.constant 0 : index
    %5 = vector.load %arg2[%c0_1, %c0_2, %c0_3] : memref<4x128x32xbf16, #tpu.memory_space<vmem>>, vector<1x128x32xbf16>
    %6 = vector.shape_cast %5 : vector<1x128x32xbf16> to vector<128x32xbf16>
    %cst_4 = arith.constant dense<0.000000e+00> : vector<8x32xf32>
    %7 = tpu.matmul %4, %6, %cst_4 {dimension_numbers = #tpu.dot_dimension_numbers<[1], [0], [0], [1], [0, 0, 1, 1], [], []>} : vector<8x128xbf16>, vector<128x32xbf16>, vector<8x32xf32> -> vector<8x32xf32>
    %c0_5 = arith.constant 0 : index
    %c0_6 = arith.constant 0 : index
    %c0_7 = arith.constant 0 : index
    %8 = vector.load %arg3[%c0_5, %c0_6, %c0_7] : memref<4x1x32xf32, #tpu.memory_space<vmem>>, vector<1x1x32xf32>
    %9 = vector.shape_cast %8 : vector<1x1x32xf32> to vector<1x32xf32>
    %10 = vector.broadcast %9 : vector<1x32xf32> to vector<8x32xf32>
    %11 = arith.addf %7, %10 : vector<8x32xf32>
    %cst_8 = arith.constant 0.000000e+00 : f32
    %12 = vector.broadcast %cst_8 : f32 to vector<8x32xf32>
    %13 = arith.maximumf %11, %12 : vector<8x32xf32>
    %14 = arith.truncf %13 : vector<8x32xf32> to vector<8x32xbf16>
    %c0_9 = arith.constant 0 : index
    %c0_10 = arith.constant 0 : index
    %c0_11 = arith.constant 0 : index
    %15 = vector.load %arg4[%c0_9, %c0_10, %c0_11] : memref<4x32x32xbf16, #tpu.memory_space<vmem>>, vector<1x32x32xbf16>
    %16 = vector.shape_cast %15 : vector<1x32x32xbf16> to vector<32x32xbf16>
    %cst_12 = arith.constant dense<0.000000e+00> : vector<8x32xf32>
    %17 = tpu.matmul %14, %16, %cst_12 {dimension_numbers = #tpu.dot_dimension_numbers<[1], [0], [0], [1], [0, 0, 1, 1], [], []>} : vector<8x32xbf16>, vector<32x32xbf16>, vector<8x32xf32> -> vector<8x32xf32>
    %c0_13 = arith.constant 0 : index
    %c0_14 = arith.constant 0 : index
    %c0_15 = arith.constant 0 : index
    %18 = vector.load %arg5[%c0_13, %c0_14, %c0_15] : memref<4x1x32xf32, #tpu.memory_space<vmem>>, vector<1x1x32xf32>
    %19 = vector.shape_cast %18 : vector<1x1x32xf32> to vector<1x32xf32>
    %20 = vector.broadcast %19 : vector<1x32xf32> to vector<8x32xf32>
    %21 = arith.addf %17, %20 : vector<8x32xf32>
    %cst_16 = arith.constant 0.000000e+00 : f32
    %22 = vector.broadcast %cst_16 : f32 to vector<8x32xf32>
    %23 = arith.maximumf %21, %22 : vector<8x32xf32>
    %24 = arith.truncf %23 : vector<8x32xf32> to vector<8x32xbf16>
    %c0_17 = arith.constant 0 : index
    %c0_18 = arith.constant 0 : index
    %c0_19 = arith.constant 0 : index
    %25 = vector.load %arg6[%c0_17, %c0_18, %c0_19] : memref<4x32x32xbf16, #tpu.memory_space<vmem>>, vector<1x32x32xbf16>
    %26 = vector.shape_cast %25 : vector<1x32x32xbf16> to vector<32x32xbf16>
    %cst_20 = arith.constant dense<0.000000e+00> : vector<8x32xf32>
    %27 = tpu.matmul %24, %26, %cst_20 {dimension_numbers = #tpu.dot_dimension_numbers<[1], [0], [0], [1], [0, 0, 1, 1], [], []>} : vector<8x32xbf16>, vector<32x32xbf16>, vector<8x32xf32> -> vector<8x32xf32>
    %c0_21 = arith.constant 0 : index
    %c0_22 = arith.constant 0 : index
    %c0_23 = arith.constant 0 : index
    %28 = vector.load %arg7[%c0_21, %c0_22, %c0_23] : memref<4x1x32xf32, #tpu.memory_space<vmem>>, vector<1x1x32xf32>
    %29 = vector.shape_cast %28 : vector<1x1x32xf32> to vector<1x32xf32>
    %30 = vector.broadcast %29 : vector<1x32xf32> to vector<8x32xf32>
    %31 = arith.addf %27, %30 : vector<8x32xf32>
    %cst_24 = arith.constant 0.000000e+00 : f32
    %32 = vector.broadcast %cst_24 : f32 to vector<8x32xf32>
    %33 = arith.maximumf %31, %32 : vector<8x32xf32>
    %34 = arith.truncf %33 : vector<8x32xf32> to vector<8x32xbf16>
    %c0_25 = arith.constant 0 : index
    %c0_26 = arith.constant 0 : index
    %c0_27 = arith.constant 0 : index
    %35 = vector.load %arg8[%c0_25, %c0_26, %c0_27] : memref<4x32x256xbf16, #tpu.memory_space<vmem>>, vector<1x32x256xbf16>
    %36 = vector.shape_cast %35 : vector<1x32x256xbf16> to vector<32x256xbf16>
    %cst_28 = arith.constant dense<0.000000e+00> : vector<8x256xf32>
    %37 = tpu.matmul %34, %36, %cst_28 {dimension_numbers = #tpu.dot_dimension_numbers<[1], [0], [0], [1], [0, 0, 1, 1], [], []>} : vector<8x32xbf16>, vector<32x256xbf16>, vector<8x256xf32> -> vector<8x256xf32>
    %c0_29 = arith.constant 0 : index
    %c0_30 = arith.constant 0 : index
    %c0_31 = arith.constant 0 : index
    %38 = vector.load %arg9[%c0_29, %c0_30, %c0_31] : memref<4x1x256xf32, #tpu.memory_space<vmem>>, vector<1x1x256xf32>
    %39 = vector.shape_cast %38 : vector<1x1x256xf32> to vector<1x256xf32>
    %40 = vector.broadcast %39 : vector<1x256xf32> to vector<8x256xf32>
    %41 = arith.addf %37, %40 : vector<8x256xf32>
    %42 = arith.addf %2, %41 : vector<8x256xf32>
    %43 = vector.extract_strided_slice %42 {offsets = [0, 0], sizes = [8, 128], strides = [1, 1]} : vector<8x256xf32> to vector<8x128xf32>
    %44 = arith.truncf %43 : vector<8x128xf32> to vector<8x128xbf16>
    %c1 = arith.constant 1 : index
    %c0_32 = arith.constant 0 : index
    %c0_33 = arith.constant 0 : index
    %45 = vector.load %arg2[%c1, %c0_32, %c0_33] : memref<4x128x32xbf16, #tpu.memory_space<vmem>>, vector<1x128x32xbf16>
    %46 = vector.shape_cast %45 : vector<1x128x32xbf16> to vector<128x32xbf16>
    %cst_34 = arith.constant dense<0.000000e+00> : vector<8x32xf32>
    %47 = tpu.matmul %44, %46, %cst_34 {dimension_numbers = #tpu.dot_dimension_numbers<[1], [0], [0], [1], [0, 0, 1, 1], [], []>} : vector<8x128xbf16>, vector<128x32xbf16>, vector<8x32xf32> -> vector<8x32xf32>
    %c1_35 = arith.constant 1 : index
    %c0_36 = arith.constant 0 : index
    %c0_37 = arith.constant 0 : index
    %48 = vector.load %arg3[%c1_35, %c0_36, %c0_37] : memref<4x1x32xf32, #tpu.memory_space<vmem>>, vector<1x1x32xf32>
    %49 = vector.shape_cast %48 : vector<1x1x32xf32> to vector<1x32xf32>
    %50 = vector.broadcast %49 : vector<1x32xf32> to vector<8x32xf32>
    %51 = arith.addf %47, %50 : vector<8x32xf32>
    %cst_38 = arith.constant 0.000000e+00 : f32
    %52 = vector.broadcast %cst_38 : f32 to vector<8x32xf32>
    %53 = arith.maximumf %51, %52 : vector<8x32xf32>
    %54 = arith.truncf %53 : vector<8x32xf32> to vector<8x32xbf16>
    %c1_39 = arith.constant 1 : index
    %c0_40 = arith.constant 0 : index
    %c0_41 = arith.constant 0 : index
    %55 = vector.load %arg4[%c1_39, %c0_40, %c0_41] : memref<4x32x32xbf16, #tpu.memory_space<vmem>>, vector<1x32x32xbf16>
    %56 = vector.shape_cast %55 : vector<1x32x32xbf16> to vector<32x32xbf16>
    %cst_42 = arith.constant dense<0.000000e+00> : vector<8x32xf32>
    %57 = tpu.matmul %54, %56, %cst_42 {dimension_numbers = #tpu.dot_dimension_numbers<[1], [0], [0], [1], [0, 0, 1, 1], [], []>} : vector<8x32xbf16>, vector<32x32xbf16>, vector<8x32xf32> -> vector<8x32xf32>
    %c1_43 = arith.constant 1 : index
    %c0_44 = arith.constant 0 : index
    %c0_45 = arith.constant 0 : index
    %58 = vector.load %arg5[%c1_43, %c0_44, %c0_45] : memref<4x1x32xf32, #tpu.memory_space<vmem>>, vector<1x1x32xf32>
    %59 = vector.shape_cast %58 : vector<1x1x32xf32> to vector<1x32xf32>
    %60 = vector.broadcast %59 : vector<1x32xf32> to vector<8x32xf32>
    %61 = arith.addf %57, %60 : vector<8x32xf32>
    %cst_46 = arith.constant 0.000000e+00 : f32
    %62 = vector.broadcast %cst_46 : f32 to vector<8x32xf32>
    %63 = arith.maximumf %61, %62 : vector<8x32xf32>
    %64 = arith.truncf %63 : vector<8x32xf32> to vector<8x32xbf16>
    %c1_47 = arith.constant 1 : index
    %c0_48 = arith.constant 0 : index
    %c0_49 = arith.constant 0 : index
    %65 = vector.load %arg6[%c1_47, %c0_48, %c0_49] : memref<4x32x32xbf16, #tpu.memory_space<vmem>>, vector<1x32x32xbf16>
    %66 = vector.shape_cast %65 : vector<1x32x32xbf16> to vector<32x32xbf16>
    %cst_50 = arith.constant dense<0.000000e+00> : vector<8x32xf32>
    %67 = tpu.matmul %64, %66, %cst_50 {dimension_numbers = #tpu.dot_dimension_numbers<[1], [0], [0], [1], [0, 0, 1, 1], [], []>} : vector<8x32xbf16>, vector<32x32xbf16>, vector<8x32xf32> -> vector<8x32xf32>
    %c1_51 = arith.constant 1 : index
    %c0_52 = arith.constant 0 : index
    %c0_53 = arith.constant 0 : index
    %68 = vector.load %arg7[%c1_51, %c0_52, %c0_53] : memref<4x1x32xf32, #tpu.memory_space<vmem>>, vector<1x1x32xf32>
    %69 = vector.shape_cast %68 : vector<1x1x32xf32> to vector<1x32xf32>
    %70 = vector.broadcast %69 : vector<1x32xf32> to vector<8x32xf32>
    %71 = arith.addf %67, %70 : vector<8x32xf32>
    %cst_54 = arith.constant 0.000000e+00 : f32
    %72 = vector.broadcast %cst_54 : f32 to vector<8x32xf32>
    %73 = arith.maximumf %71, %72 : vector<8x32xf32>
    %74 = arith.truncf %73 : vector<8x32xf32> to vector<8x32xbf16>
    %c1_55 = arith.constant 1 : index
    %c0_56 = arith.constant 0 : index
    %c0_57 = arith.constant 0 : index
    %75 = vector.load %arg8[%c1_55, %c0_56, %c0_57] : memref<4x32x256xbf16, #tpu.memory_space<vmem>>, vector<1x32x256xbf16>
    %76 = vector.shape_cast %75 : vector<1x32x256xbf16> to vector<32x256xbf16>
    %cst_58 = arith.constant dense<0.000000e+00> : vector<8x256xf32>
    %77 = tpu.matmul %74, %76, %cst_58 {dimension_numbers = #tpu.dot_dimension_numbers<[1], [0], [0], [1], [0, 0, 1, 1], [], []>} : vector<8x32xbf16>, vector<32x256xbf16>, vector<8x256xf32> -> vector<8x256xf32>
    %c1_59 = arith.constant 1 : index
    %c0_60 = arith.constant 0 : index
    %c0_61 = arith.constant 0 : index
    %78 = vector.load %arg9[%c1_59, %c0_60, %c0_61] : memref<4x1x256xf32, #tpu.memory_space<vmem>>, vector<1x1x256xf32>
    %79 = vector.shape_cast %78 : vector<1x1x256xf32> to vector<1x256xf32>
    %80 = vector.broadcast %79 : vector<1x256xf32> to vector<8x256xf32>
    %81 = arith.addf %77, %80 : vector<8x256xf32>
    %82 = arith.addf %42, %81 : vector<8x256xf32>
    %83 = vector.extract_strided_slice %82 {offsets = [0, 0], sizes = [8, 128], strides = [1, 1]} : vector<8x256xf32> to vector<8x128xf32>
    %84 = arith.truncf %83 : vector<8x128xf32> to vector<8x128xbf16>
    %c2 = arith.constant 2 : index
    %c0_62 = arith.constant 0 : index
    %c0_63 = arith.constant 0 : index
    %85 = vector.load %arg2[%c2, %c0_62, %c0_63] : memref<4x128x32xbf16, #tpu.memory_space<vmem>>, vector<1x128x32xbf16>
    %86 = vector.shape_cast %85 : vector<1x128x32xbf16> to vector<128x32xbf16>
    %cst_64 = arith.constant dense<0.000000e+00> : vector<8x32xf32>
    %87 = tpu.matmul %84, %86, %cst_64 {dimension_numbers = #tpu.dot_dimension_numbers<[1], [0], [0], [1], [0, 0, 1, 1], [], []>} : vector<8x128xbf16>, vector<128x32xbf16>, vector<8x32xf32> -> vector<8x32xf32>
    %c2_65 = arith.constant 2 : index
    %c0_66 = arith.constant 0 : index
    %c0_67 = arith.constant 0 : index
    %88 = vector.load %arg3[%c2_65, %c0_66, %c0_67] : memref<4x1x32xf32, #tpu.memory_space<vmem>>, vector<1x1x32xf32>
    %89 = vector.shape_cast %88 : vector<1x1x32xf32> to vector<1x32xf32>
    %90 = vector.broadcast %89 : vector<1x32xf32> to vector<8x32xf32>
    %91 = arith.addf %87, %90 : vector<8x32xf32>
    %cst_68 = arith.constant 0.000000e+00 : f32
    %92 = vector.broadcast %cst_68 : f32 to vector<8x32xf32>
    %93 = arith.maximumf %91, %92 : vector<8x32xf32>
    %94 = arith.truncf %93 : vector<8x32xf32> to vector<8x32xbf16>
    %c2_69 = arith.constant 2 : index
    %c0_70 = arith.constant 0 : index
    %c0_71 = arith.constant 0 : index
    %95 = vector.load %arg4[%c2_69, %c0_70, %c0_71] : memref<4x32x32xbf16, #tpu.memory_space<vmem>>, vector<1x32x32xbf16>
    %96 = vector.shape_cast %95 : vector<1x32x32xbf16> to vector<32x32xbf16>
    %cst_72 = arith.constant dense<0.000000e+00> : vector<8x32xf32>
    %97 = tpu.matmul %94, %96, %cst_72 {dimension_numbers = #tpu.dot_dimension_numbers<[1], [0], [0], [1], [0, 0, 1, 1], [], []>} : vector<8x32xbf16>, vector<32x32xbf16>, vector<8x32xf32> -> vector<8x32xf32>
    %c2_73 = arith.constant 2 : index
    %c0_74 = arith.constant 0 : index
    %c0_75 = arith.constant 0 : index
    %98 = vector.load %arg5[%c2_73, %c0_74, %c0_75] : memref<4x1x32xf32, #tpu.memory_space<vmem>>, vector<1x1x32xf32>
    %99 = vector.shape_cast %98 : vector<1x1x32xf32> to vector<1x32xf32>
    %100 = vector.broadcast %99 : vector<1x32xf32> to vector<8x32xf32>
    %101 = arith.addf %97, %100 : vector<8x32xf32>
    %cst_76 = arith.constant 0.000000e+00 : f32
    %102 = vector.broadcast %cst_76 : f32 to vector<8x32xf32>
    %103 = arith.maximumf %101, %102 : vector<8x32xf32>
    %104 = arith.truncf %103 : vector<8x32xf32> to vector<8x32xbf16>
    %c2_77 = arith.constant 2 : index
    %c0_78 = arith.constant 0 : index
    %c0_79 = arith.constant 0 : index
    %105 = vector.load %arg6[%c2_77, %c0_78, %c0_79] : memref<4x32x32xbf16, #tpu.memory_space<vmem>>, vector<1x32x32xbf16>
    %106 = vector.shape_cast %105 : vector<1x32x32xbf16> to vector<32x32xbf16>
    %cst_80 = arith.constant dense<0.000000e+00> : vector<8x32xf32>
    %107 = tpu.matmul %104, %106, %cst_80 {dimension_numbers = #tpu.dot_dimension_numbers<[1], [0], [0], [1], [0, 0, 1, 1], [], []>} : vector<8x32xbf16>, vector<32x32xbf16>, vector<8x32xf32> -> vector<8x32xf32>
    %c2_81 = arith.constant 2 : index
    %c0_82 = arith.constant 0 : index
    %c0_83 = arith.constant 0 : index
    %108 = vector.load %arg7[%c2_81, %c0_82, %c0_83] : memref<4x1x32xf32, #tpu.memory_space<vmem>>, vector<1x1x32xf32>
    %109 = vector.shape_cast %108 : vector<1x1x32xf32> to vector<1x32xf32>
    %110 = vector.broadcast %109 : vector<1x32xf32> to vector<8x32xf32>
    %111 = arith.addf %107, %110 : vector<8x32xf32>
    %cst_84 = arith.constant 0.000000e+00 : f32
    %112 = vector.broadcast %cst_84 : f32 to vector<8x32xf32>
    %113 = arith.maximumf %111, %112 : vector<8x32xf32>
    %114 = arith.truncf %113 : vector<8x32xf32> to vector<8x32xbf16>
    %c2_85 = arith.constant 2 : index
    %c0_86 = arith.constant 0 : index
    %c0_87 = arith.constant 0 : index
    %115 = vector.load %arg8[%c2_85, %c0_86, %c0_87] : memref<4x32x256xbf16, #tpu.memory_space<vmem>>, vector<1x32x256xbf16>
    %116 = vector.shape_cast %115 : vector<1x32x256xbf16> to vector<32x256xbf16>
    %cst_88 = arith.constant dense<0.000000e+00> : vector<8x256xf32>
    %117 = tpu.matmul %114, %116, %cst_88 {dimension_numbers = #tpu.dot_dimension_numbers<[1], [0], [0], [1], [0, 0, 1, 1], [], []>} : vector<8x32xbf16>, vector<32x256xbf16>, vector<8x256xf32> -> vector<8x256xf32>
    %c2_89 = arith.constant 2 : index
    %c0_90 = arith.constant 0 : index
    %c0_91 = arith.constant 0 : index
    %118 = vector.load %arg9[%c2_89, %c0_90, %c0_91] : memref<4x1x256xf32, #tpu.memory_space<vmem>>, vector<1x1x256xf32>
    %119 = vector.shape_cast %118 : vector<1x1x256xf32> to vector<1x256xf32>
    %120 = vector.broadcast %119 : vector<1x256xf32> to vector<8x256xf32>
    %121 = arith.addf %117, %120 : vector<8x256xf32>
    %122 = arith.addf %82, %121 : vector<8x256xf32>
    %123 = vector.extract_strided_slice %122 {offsets = [0, 0], sizes = [8, 128], strides = [1, 1]} : vector<8x256xf32> to vector<8x128xf32>
    %124 = arith.truncf %123 : vector<8x128xf32> to vector<8x128xbf16>
    %c3 = arith.constant 3 : index
    %c0_92 = arith.constant 0 : index
    %c0_93 = arith.constant 0 : index
    %125 = vector.load %arg2[%c3, %c0_92, %c0_93] : memref<4x128x32xbf16, #tpu.memory_space<vmem>>, vector<1x128x32xbf16>
    %126 = vector.shape_cast %125 : vector<1x128x32xbf16> to vector<128x32xbf16>
    %cst_94 = arith.constant dense<0.000000e+00> : vector<8x32xf32>
    %127 = tpu.matmul %124, %126, %cst_94 {dimension_numbers = #tpu.dot_dimension_numbers<[1], [0], [0], [1], [0, 0, 1, 1], [], []>} : vector<8x128xbf16>, vector<128x32xbf16>, vector<8x32xf32> -> vector<8x32xf32>
    %c3_95 = arith.constant 3 : index
    %c0_96 = arith.constant 0 : index
    %c0_97 = arith.constant 0 : index
    %128 = vector.load %arg3[%c3_95, %c0_96, %c0_97] : memref<4x1x32xf32, #tpu.memory_space<vmem>>, vector<1x1x32xf32>
    %129 = vector.shape_cast %128 : vector<1x1x32xf32> to vector<1x32xf32>
    %130 = vector.broadcast %129 : vector<1x32xf32> to vector<8x32xf32>
    %131 = arith.addf %127, %130 : vector<8x32xf32>
    %cst_98 = arith.constant 0.000000e+00 : f32
    %132 = vector.broadcast %cst_98 : f32 to vector<8x32xf32>
    %133 = arith.maximumf %131, %132 : vector<8x32xf32>
    %134 = arith.truncf %133 : vector<8x32xf32> to vector<8x32xbf16>
    %c3_99 = arith.constant 3 : index
    %c0_100 = arith.constant 0 : index
    %c0_101 = arith.constant 0 : index
    %135 = vector.load %arg4[%c3_99, %c0_100, %c0_101] : memref<4x32x32xbf16, #tpu.memory_space<vmem>>, vector<1x32x32xbf16>
    %136 = vector.shape_cast %135 : vector<1x32x32xbf16> to vector<32x32xbf16>
    %cst_102 = arith.constant dense<0.000000e+00> : vector<8x32xf32>
    %137 = tpu.matmul %134, %136, %cst_102 {dimension_numbers = #tpu.dot_dimension_numbers<[1], [0], [0], [1], [0, 0, 1, 1], [], []>} : vector<8x32xbf16>, vector<32x32xbf16>, vector<8x32xf32> -> vector<8x32xf32>
    %c3_103 = arith.constant 3 : index
    %c0_104 = arith.constant 0 : index
    %c0_105 = arith.constant 0 : index
    %138 = vector.load %arg5[%c3_103, %c0_104, %c0_105] : memref<4x1x32xf32, #tpu.memory_space<vmem>>, vector<1x1x32xf32>
    %139 = vector.shape_cast %138 : vector<1x1x32xf32> to vector<1x32xf32>
    %140 = vector.broadcast %139 : vector<1x32xf32> to vector<8x32xf32>
    %141 = arith.addf %137, %140 : vector<8x32xf32>
    %cst_106 = arith.constant 0.000000e+00 : f32
    %142 = vector.broadcast %cst_106 : f32 to vector<8x32xf32>
    %143 = arith.maximumf %141, %142 : vector<8x32xf32>
    %144 = arith.truncf %143 : vector<8x32xf32> to vector<8x32xbf16>
    %c3_107 = arith.constant 3 : index
    %c0_108 = arith.constant 0 : index
    %c0_109 = arith.constant 0 : index
    %145 = vector.load %arg6[%c3_107, %c0_108, %c0_109] : memref<4x32x32xbf16, #tpu.memory_space<vmem>>, vector<1x32x32xbf16>
    %146 = vector.shape_cast %145 : vector<1x32x32xbf16> to vector<32x32xbf16>
    %cst_110 = arith.constant dense<0.000000e+00> : vector<8x32xf32>
    %147 = tpu.matmul %144, %146, %cst_110 {dimension_numbers = #tpu.dot_dimension_numbers<[1], [0], [0], [1], [0, 0, 1, 1], [], []>} : vector<8x32xbf16>, vector<32x32xbf16>, vector<8x32xf32> -> vector<8x32xf32>
    %c3_111 = arith.constant 3 : index
    %c0_112 = arith.constant 0 : index
    %c0_113 = arith.constant 0 : index
    %148 = vector.load %arg7[%c3_111, %c0_112, %c0_113] : memref<4x1x32xf32, #tpu.memory_space<vmem>>, vector<1x1x32xf32>
    %149 = vector.shape_cast %148 : vector<1x1x32xf32> to vector<1x32xf32>
    %150 = vector.broadcast %149 : vector<1x32xf32> to vector<8x32xf32>
    %151 = arith.addf %147, %150 : vector<8x32xf32>
    %cst_114 = arith.constant 0.000000e+00 : f32
    %152 = vector.broadcast %cst_114 : f32 to vector<8x32xf32>
    %153 = arith.maximumf %151, %152 : vector<8x32xf32>
    %154 = arith.truncf %153 : vector<8x32xf32> to vector<8x32xbf16>
    %c3_115 = arith.constant 3 : index
    %c0_116 = arith.constant 0 : index
    %c0_117 = arith.constant 0 : index
    %155 = vector.load %arg8[%c3_115, %c0_116, %c0_117] : memref<4x32x256xbf16, #tpu.memory_space<vmem>>, vector<1x32x256xbf16>
    %156 = vector.shape_cast %155 : vector<1x32x256xbf16> to vector<32x256xbf16>
    %cst_118 = arith.constant dense<0.000000e+00> : vector<8x256xf32>
    %157 = tpu.matmul %154, %156, %cst_118 {dimension_numbers = #tpu.dot_dimension_numbers<[1], [0], [0], [1], [0, 0, 1, 1], [], []>} : vector<8x32xbf16>, vector<32x256xbf16>, vector<8x256xf32> -> vector<8x256xf32>
    %c3_119 = arith.constant 3 : index
    %c0_120 = arith.constant 0 : index
    %c0_121 = arith.constant 0 : index
    %158 = vector.load %arg9[%c3_119, %c0_120, %c0_121] : memref<4x1x256xf32, #tpu.memory_space<vmem>>, vector<1x1x256xf32>
    %159 = vector.shape_cast %158 : vector<1x1x256xf32> to vector<1x256xf32>
    %160 = vector.broadcast %159 : vector<1x256xf32> to vector<8x256xf32>
    %161 = arith.addf %157, %160 : vector<8x256xf32>
    %162 = arith.addf %122, %161 : vector<8x256xf32>
    %163 = vector.extract_strided_slice %162 {offsets = [0, 128], sizes = [8, 128], strides = [1, 1]} : vector<8x256xf32> to vector<8x128xf32>
    %c0_122 = arith.constant 0 : index
    %c0_123 = arith.constant 0 : index
    %164 = vector.load %arg10[%c0_122, %c0_123] : memref<8x128xf32, #tpu.memory_space<vmem>>, vector<8x128xf32>
    tpu.vector_store %arg10[%c0_122, %c0_123], %163 {strides = array<i32>} : memref<8x128xf32, #tpu.memory_space<vmem>>, vector<8x128xf32>,
    return
  }
  func.func @transform_0(%arg0: i32) -> (i32, i32) {
    %c0_i32 = arith.constant 0 : i32
    %c0_i32_0 = arith.constant 0 : i32
    return %arg0, %c0_i32 : i32, i32
  }
  func.func @transform_1(%arg0: i32) -> (i32, i32, i32) {
    %c0_i32 = arith.constant 0 : i32
    %c0_i32_0 = arith.constant 0 : i32
    %c0_i32_1 = arith.constant 0 : i32
    %c0_i32_2 = arith.constant 0 : i32
    return %c0_i32, %c0_i32_0, %c0_i32_1 : i32, i32, i32
  }
  func.func @transform_2(%arg0: i32) -> (i32, i32, i32) {
    %c0_i32 = arith.constant 0 : i32
    %c0_i32_0 = arith.constant 0 : i32
    %c0_i32_1 = arith.constant 0 : i32
    %c0_i32_2 = arith.constant 0 : i32
    return %c0_i32, %c0_i32_0, %c0_i32_1 : i32, i32, i32
  }
  func.func @transform_3(%arg0: i32) -> (i32, i32, i32) {
    %c0_i32 = arith.constant 0 : i32
    %c0_i32_0 = arith.constant 0 : i32
    %c0_i32_1 = arith.constant 0 : i32
    %c0_i32_2 = arith.constant 0 : i32
    return %c0_i32, %c0_i32_0, %c0_i32_1 : i32, i32, i32
  }
  func.func @transform_4(%arg0: i32) -> (i32, i32, i32) {
    %c0_i32 = arith.constant 0 : i32
    %c0_i32_0 = arith.constant 0 : i32
    %c0_i32_1 = arith.constant 0 : i32
    %c0_i32_2 = arith.constant 0 : i32
    return %c0_i32, %c0_i32_0, %c0_i32_1 : i32, i32, i32
  }
  func.func @transform_5(%arg0: i32) -> (i32, i32, i32) {
    %c0_i32 = arith.constant 0 : i32
    %c0_i32_0 = arith.constant 0 : i32
    %c0_i32_1 = arith.constant 0 : i32
    %c0_i32_2 = arith.constant 0 : i32
    return %c0_i32, %c0_i32_0, %c0_i32_1 : i32, i32, i32
  }
  func.func @transform_6(%arg0: i32) -> (i32, i32, i32) {
    %c0_i32 = arith.constant 0 : i32
    %c0_i32_0 = arith.constant 0 : i32
    %c0_i32_1 = arith.constant 0 : i32
    %c0_i32_2 = arith.constant 0 : i32
    return %c0_i32, %c0_i32_0, %c0_i32_1 : i32, i32, i32
  }
  func.func @transform_7(%arg0: i32) -> (i32, i32, i32) {
    %c0_i32 = arith.constant 0 : i32
    %c0_i32_0 = arith.constant 0 : i32
    %c0_i32_1 = arith.constant 0 : i32
    %c0_i32_2 = arith.constant 0 : i32
    return %c0_i32, %c0_i32_0, %c0_i32_1 : i32, i32, i32
  }
  func.func @transform_8(%arg0: i32) -> (i32, i32, i32) {
    %c0_i32 = arith.constant 0 : i32
    %c0_i32_0 = arith.constant 0 : i32
    %c0_i32_1 = arith.constant 0 : i32
    %c0_i32_2 = arith.constant 0 : i32
    return %c0_i32, %c0_i32_0, %c0_i32_1 : i32, i32, i32
  }
  func.func @transform_9(%arg0: i32) -> (i32, i32) {
    %c0_i32 = arith.constant 0 : i32
    %c0_i32_0 = arith.constant 0 : i32
    return %arg0, %c0_i32 : i32, i32
  }
}

</mosaic_0001>

<llo_original>
// kernel: tpu_custom_call.1
$region0: #{tpu_custom_call.1}
  #allocation0 [shape = 'u32[]', space=smem, size = 0x4, offset = 0x4, fixed_abs, tag = 'smem constant byte address 0x4 - core index']
  #allocation1 [shape = 'u32[144,128]{1,0:T(1,128)}', space=vmem, size = 0x12000, scoped, tag = 'internal scratch']
  %s0 = inlined_call_operand.vmem [shape: f32[8,128], index: 0, kind: input, shape index: {}]
  %s1 = inlined_call_operand.vmem [shape: bf16[4,128,32], index: 1, kind: input, shape index: {}]
  %s2 = inlined_call_operand.vmem [shape: f32[4,1,32], index: 2, kind: input, shape index: {}]
  %s3 = inlined_call_operand.vmem [shape: bf16[4,32,32], index: 3, kind: input, shape index: {}]
  %s4 = inlined_call_operand.vmem [shape: f32[4,1,32], index: 4, kind: input, shape index: {}]
  %s5 = inlined_call_operand.vmem [shape: bf16[4,32,32], index: 5, kind: input, shape index: {}]
  %s6 = inlined_call_operand.vmem [shape: f32[4,1,32], index: 6, kind: input, shape index: {}]
  %s7 = inlined_call_operand.vmem [shape: bf16[4,32,256], index: 7, kind: input, shape index: {}]
  %s8 = inlined_call_operand.vmem [shape: f32[4,1,256], index: 8, kind: input, shape index: {}]
  %s9 = inlined_call_operand.hbm [shape: f32[8,128], index: 9, kind: output, shape index: {}]
  %s10 = sld [smem:[#allocation0]]
  $region46: #{tpu_custom_call.1} parent=0
    _
  %s12 = ssub.s32 1, %s10
  %s13 = scalar_select 0, %s12, %s10
  $region1: #{tpu_custom_call.1} parent=0
    #allocation2 [shape = 'u8[4096]{0}', space=vmem, size = 0x1000, scoped, tag = 'output window, operand 0, single buffered']
    #allocation3 [shape = 's32[1]{0}', space=sflag, size = 0x4, scoped, tag = 'scoped memory for tpu_custom_call.1']
    %14 = vsyncpa [#allocation3], 0
    // Predicated region
    $region2: #{tpu_custom_call.1} parent=1 // pred_check
      _
    $region3: #{tpu_custom_call.1} parent=1 // pred_check_branch
      %16 = sbr.rel (0) target = $region5
    $region4: #{tpu_custom_call.1} parent=1 // pred_region
      _
    $region5: #{tpu_custom_call.1} parent=1 // pred_fallthru
      _
    // Predicated region
    $region6: #{tpu_custom_call.1} parent=1 // pred_check
      _
    $region7: #{tpu_custom_call.1} parent=1 // pred_check_branch
      %18 = sbr.rel (0) target = $region9
    $region8: #{tpu_custom_call.1} parent=1 // pred_region
      _
    $region9: #{tpu_custom_call.1} parent=1 // pred_fallthru
      _
    // Predicated region
    $region10: #{tpu_custom_call.1} parent=1 // pred_check
      _
    $region11: #{tpu_custom_call.1} parent=1 // pred_check_branch
      %20 = sbr.rel (0) target = $region13
    $region12: #{tpu_custom_call.1} parent=1 // pred_region
      _
    $region13: #{tpu_custom_call.1} parent=1 // pred_fallthru
      _
    // Predicated region
    $region14: #{tpu_custom_call.1} parent=1 // pred_check
      _
    $region15: #{tpu_custom_call.1} parent=1 // pred_check_branch
      %22 = sbr.rel (0) target = $region17
    $region16: #{tpu_custom_call.1} parent=1 // pred_region
      _
    $region17: #{tpu_custom_call.1} parent=1 // pred_fallthru
      _
    // Predicated region
    $region18: #{tpu_custom_call.1} parent=1 // pred_check
      _
    $region19: #{tpu_custom_call.1} parent=1 // pred_check_branch
      %24 = sbr.rel (0) target = $region21
    $region20: #{tpu_custom_call.1} parent=1 // pred_region
      _
    $region21: #{tpu_custom_call.1} parent=1 // pred_fallthru
      _
    // Predicated region
    $region22: #{tpu_custom_call.1} parent=1 // pred_check
      _
    $region23: #{tpu_custom_call.1} parent=1 // pred_check_branch
      %26 = sbr.rel (0) target = $region25
    $region24: #{tpu_custom_call.1} parent=1 // pred_region
      _
    $region25: #{tpu_custom_call.1} parent=1 // pred_fallthru
      _
    // Predicated region
    $region26: #{tpu_custom_call.1} parent=1 // pred_check
      _
    $region27: #{tpu_custom_call.1} parent=1 // pred_check_branch
      %28 = sbr.rel (0) target = $region29
    $region28: #{tpu_custom_call.1} parent=1 // pred_region
      _
    $region29: #{tpu_custom_call.1} parent=1 // pred_fallthru
      _
    // Predicated region
    $region30: #{tpu_custom_call.1} parent=1 // pred_check
      _
    $region31: #{tpu_custom_call.1} parent=1 // pred_check_branch
      %30 = sbr.rel (0) target = $region33
    $region32: #{tpu_custom_call.1} parent=1 // pred_region
      _
    $region33: #{tpu_custom_call.1} parent=1 // pred_fallthru
      _
    // Predicated region
    $region34: #{tpu_custom_call.1} parent=1 // pred_check
      _
    $region35: #{tpu_custom_call.1} parent=1 // pred_check_branch
      %32 = sbr.rel (0) target = $region37
    $region36: #{tpu_custom_call.1} parent=1 // pred_region
      _
    $region37: #{tpu_custom_call.1} parent=1 // pred_fallthru
      _
    %v34 = vld [vmem:[%s0] sm:$0xff]
    %v35 = vpack.c.bf16 %v34, %v34
    %v36 = vld [vmem:[%s1] sm:$0xf]
    %v37 = vld [vmem:[%s1 + $0x4] sm:$0xf]
    %v38 = vld [vmem:[%s1 + $0x8] sm:$0xf]
    %v39 = vld [vmem:[%s1 + $0xc] sm:$0xf]
    %v40 = vld [vmem:[%s1 + $0x10] sm:$0xf]
    %v41 = vld [vmem:[%s1 + $0x14] sm:$0xf]
    %v42 = vld [vmem:[%s1 + $0x18] sm:$0xf]
    %v43 = vld [vmem:[%s1 + $0x1c] sm:$0xf]
    %v44 = vld [vmem:[%s1 + $0x20] sm:$0xf]
    %v45 = vld [vmem:[%s1 + $0x24] sm:$0xf]
    %v46 = vld [vmem:[%s1 + $0x28] sm:$0xf]
    %v47 = vld [vmem:[%s1 + $0x2c] sm:$0xf]
    %v48 = vld [vmem:[%s1 + $0x30] sm:$0xf]
    %v49 = vld [vmem:[%s1 + $0x34] sm:$0xf]
    %v50 = vld [vmem:[%s1 + $0x38] sm:$0xf]
    %v51 = vld [vmem:[%s1 + $0x3c] sm:$0xf]
    %v52 = vld [vmem:[%s2] sm:$0x1]
    %v54 = vlaneseq
    %v55 = vshrl.u32 %v54, 7
    %v56 = vsub.s32 0, %v55
    %v57 = vrot.slane %v52, %v56
    %v75 = vunpack.c.l.b16 %v36
    %v76 = vunpack.c.l.b16 %v37
    %v77 = vunpack.c.l.b16 %v38
    %v78 = vunpack.c.l.b16 %v39
    %v79 = vunpack.c.l.b16 %v40
    %v80 = vunpack.c.l.b16 %v41
    %v81 = vunpack.c.l.b16 %v42
    %v82 = vunpack.c.l.b16 %v43
    %v83 = vunpack.c.l.b16 %v44
    %v84 = vunpack.c.l.b16 %v45
    %v85 = vunpack.c.l.b16 %v46
    %v86 = vunpack.c.l.b16 %v47
    %v87 = vunpack.c.l.b16 %v48
    %v88 = vunpack.c.l.b16 %v49
    %v89 = vunpack.c.l.b16 %v50
    %v90 = vunpack.c.l.b16 %v51
    %v91 = vpack.c.b16 %v76, %v75
    %v92 = vpack.c.b16 %v78, %v77
    %v93 = vpack.c.b16 %v80, %v79
    %v94 = vpack.c.b16 %v82, %v81
    %v95 = vpack.c.b16 %v84, %v83
    %v96 = vpack.c.b16 %v86, %v85
    %v97 = vpack.c.b16 %v88, %v87
    %v98 = vpack.c.b16 %v90, %v89
    %107 = vmatprep.subr.bf16.mxu0 0
    %108 = vmatpush1.bf16.msra.mxu0 %v91
    %109 = vmatprep.subr.bf16.mxu0 0
    %110 = vmatpush1.bf16.msra.mxu0 %v92
    %111 = vmatprep.subr.bf16.mxu0 0
    %112 = vmatpush1.bf16.msra.mxu0 %v93
    %113 = vmatprep.subr.bf16.mxu0 0
    %114 = vmatpush1.bf16.msra.mxu0 %v94
    %115 = vmatprep.subr.bf16.mxu0 0
    %116 = vmatpush1.bf16.msra.mxu0 %v95
    %117 = vmatprep.subr.bf16.mxu0 0
    %118 = vmatpush1.bf16.msra.mxu0 %v96
    %119 = vmatprep.subr.bf16.mxu0 0
    %120 = vmatpush1.bf16.msra.mxu0 %v97
    %121 = vmatprep.subr.bf16.mxu0 0
    %122 = vmatpush1.bf16.msra.mxu0 %v98
    %123 = vmatprep.subr.bf16.mxu0 0
    %124 = vmatpush1.bf16.msra.mxu0 0
    %125 = vmatprep.subr.bf16.mxu0 0
    %126 = vmatpush1.bf16.msra.mxu0 0
    %127 = vmatprep.subr.bf16.mxu0 0
    %128 = vmatpush1.bf16.msra.mxu0 0
    %129 = vmatprep.subr.bf16.mxu0 0
    %130 = vmatpush1.bf16.msra.mxu0 0
    %131 = vmatprep.subr.bf16.mxu0 0
    %132 = vmatpush1.bf16.msra.mxu0 0
    %133 = vmatprep.subr.bf16.mxu0 0
    %134 = vmatpush1.bf16.msra.mxu0 0
    %135 = vmatprep.subr.bf16.mxu0 0
    %136 = vmatpush1.bf16.msra.mxu0 0
    %137 = vmatprep.subr.bf16.mxu0 0
    %138 = vmatpush1.bf16.msra.mxu0 0
    %139 = vmatprep.mubr.bf16.mxu0 0
    %140 = vmatmul.mubr.bf16.gmra.mrb[0].mxu0 %v35
    %v141 = vpop.f32.mrb[0].mxu0
    %v142 = vadd.f32 %v57, %v141
    %v143 = vpop.f32.mrb[0].mxu0
    %v144 = vpop.f32.mrb[0].mxu0
    %v145 = vpop.f32.mrb[0].mxu0
    %146 = vdwg.mxu0
    %v147 = vmax.f32 %v142, 0.0
    %v148 = vpack.c.bf16 %v147, %v147
    %v149 = vld [vmem:[%s3] sm:$0xf]
    %v150 = vld [vmem:[%s3 + $0x4] sm:$0xf]
    %v151 = vld [vmem:[%s3 + $0x8] sm:$0xf]
    %v152 = vld [vmem:[%s3 + $0xc] sm:$0xf]
    %v153 = vld [vmem:[%s4] sm:$0x1]
    %v155 = vlaneseq
    %v156 = vshrl.u32 %v155, 7
    %v157 = vsub.s32 0, %v156
    %v158 = vrot.slane %v153, %v157
    %v164 = vunpack.c.l.b16 %v149
    %v165 = vunpack.c.l.b16 %v150
    %v166 = vunpack.c.l.b16 %v151
    %v167 = vunpack.c.l.b16 %v152
    %v168 = vpack.c.b16 %v165, %v164
    %v169 = vpack.c.b16 %v167, %v166
    %vm172 = vcmask 261120
    %v174 = vsel %vm172, %v148, 0
    %176 = vmatprep.subr.bf16.mxu0 0
    %177 = vmatpush1.bf16.msra.mxu0 %v168
    %178 = vmatprep.subr.bf16.mxu0 0
    %179 = vmatpush1.bf16.msra.mxu0 %v169
    %180 = vmatprep.subr.bf16.mxu0 0
    %181 = vmatpush1.bf16.msra.mxu0 0
    %182 = vmatprep.subr.bf16.mxu0 0
    %183 = vmatpush1.bf16.msra.mxu0 0
    %184 = vmatprep.subr.bf16.mxu0 0
    %185 = vmatpush1.bf16.msra.mxu0 0
    %186 = vmatprep.subr.bf16.mxu0 0
    %187 = vmatpush1.bf16.msra.mxu0 0
    %188 = vmatprep.subr.bf16.mxu0 0
    %189 = vmatpush1.bf16.msra.mxu0 0
    %190 = vmatprep.subr.bf16.mxu0 0
    %191 = vmatpush1.bf16.msra.mxu0 0
    %192 = vmatprep.subr.bf16.mxu0 0
    %193 = vmatpush1.bf16.msra.mxu0 0
    %194 = vmatprep.subr.bf16.mxu0 0
    %195 = vmatpush1.bf16.msra.mxu0 0
    %196 = vmatprep.subr.bf16.mxu0 0
    %197 = vmatpush1.bf16.msra.mxu0 0
    %198 = vmatprep.subr.bf16.mxu0 0
    %199 = vmatpush1.bf16.msra.mxu0 0
    %200 = vmatprep.subr.bf16.mxu0 0
    %201 = vmatpush1.bf16.msra.mxu0 0
    %202 = vmatprep.subr.bf16.mxu0 0
    %203 = vmatpush1.bf16.msra.mxu0 0
    %204 = vmatprep.subr.bf16.mxu0 0
    %205 = vmatpush1.bf16.msra.mxu0 0
    %206 = vmatprep.subr.bf16.mxu0 0
    %207 = vmatpush1.bf16.msra.mxu0 0
    %208 = vmatprep.mubr.bf16.mxu0 0
    %209 = vmatmul.mubr.bf16.gmra.mrb[0].mxu0 %v174
    %v210 = vpop.f32.mrb[0].mxu0
    %v211 = vadd.f32 %v158, %v210
    %v212 = vpop.f32.mrb[0].mxu0
    %v213 = vpop.f32.mrb[0].mxu0
    %v214 = vpop.f32.mrb[0].mxu0
    %215 = vdwg.mxu0
    %v216 = vmax.f32 %v211, 0.0
    %v217 = vpack.c.bf16 %v216, %v216
    %v218 = vld [vmem:[%s5] sm:$0xf]
    %v219 = vld [vmem:[%s5 + $0x4] sm:$0xf]
    %v220 = vld [vmem:[%s5 + $0x8] sm:$0xf]
    %v221 = vld [vmem:[%s5 + $0xc] sm:$0xf]
    %v222 = vld [vmem:[%s6] sm:$0x1]
    %v224 = vlaneseq
    %v225 = vshrl.u32 %v224, 7
    %v226 = vsub.s32 0, %v225
    %v227 = vrot.slane %v222, %v226
    %v233 = vunpack.c.l.b16 %v218
    %v234 = vunpack.c.l.b16 %v219
    %v235 = vunpack.c.l.b16 %v220
    %v236 = vunpack.c.l.b16 %v221
    %v237 = vpack.c.b16 %v234, %v233
    %v238 = vpack.c.b16 %v236, %v235
    %v242 = vsel %vm172, %v217, 0
    %244 = vmatprep.subr.bf16.mxu0 0
    %245 = vmatpush1.bf16.msra.mxu0 %v237
    %246 = vmatprep.subr.bf16.mxu0 0
    %247 = vmatpush1.bf16.msra.mxu0 %v238
    %248 = vmatprep.subr.bf16.mxu0 0
    %249 = vmatpush1.bf16.msra.mxu0 0
    %250 = vmatprep.subr.bf16.mxu0 0
    %251 = vmatpush1.bf16.msra.mxu0 0
    %252 = vmatprep.subr.bf16.mxu0 0
    %253 = vmatpush1.bf16.msra.mxu0 0
    %254 = vmatprep.subr.bf16.mxu0 0
    %255 = vmatpush1.bf16.msra.mxu0 0
    %256 = vmatprep.subr.bf16.mxu0 0
    %257 = vmatpush1.bf16.msra.mxu0 0
    %258 = vmatprep.subr.bf16.mxu0 0
    %259 = vmatpush1.bf16.msra.mxu0 0
    %260 = vmatprep.subr.bf16.mxu0 0
    %261 = vmatpush1.bf16.msra.mxu0 0
    %262 = vmatprep.subr.bf16.mxu0 0
    %263 = vmatpush1.bf16.msra.mxu0 0
    %264 = vmatprep.subr.bf16.mxu0 0
    %265 = vmatpush1.bf16.msra.mxu0 0
    %266 = vmatprep.subr.bf16.mxu0 0
    %267 = vmatpush1.bf16.msra.mxu0 0
    %268 = vmatprep.subr.bf16.mxu0 0
    %269 = vmatpush1.bf16.msra.mxu0 0
    %270 = vmatprep.subr.bf16.mxu0 0
    %271 = vmatpush1.bf16.msra.mxu0 0
    %272 = vmatprep.subr.bf16.mxu0 0
    %273 = vmatpush1.bf16.msra.mxu0 0
    %274 = vmatprep.subr.bf16.mxu0 0
    %275 = vmatpush1.bf16.msra.mxu0 0
    %276 = vmatprep.mubr.bf16.mxu0 0
    %277 = vmatmul.mubr.bf16.gmra.mrb[0].mxu0 %v242
    %v278 = vpop.f32.mrb[0].mxu0
    %v279 = vadd.f32 %v227, %v278
    %v280 = vpop.f32.mrb[0].mxu0
    %v281 = vpop.f32.mrb[0].mxu0
    %v282 = vpop.f32.mrb[0].mxu0
    %283 = vdwg.mxu0
    %v284 = vmax.f32 %v279, 0.0
    %v285 = vpack.c.bf16 %v284, %v284
    %v286 = vld [vmem:[%s7] sm:$0xff]
    %v287 = vld [vmem:[%s7 + $0x8] sm:$0xff]
    %v288 = vld [vmem:[%s7 + $0x10] sm:$0xff]
    %v289 = vld [vmem:[%s7 + $0x18] sm:$0xff]
    %v290 = vld [vmem:[%s8] sm:$0x3]
    %v292 = vlaneseq
    %v293 = vshrl.u32 %v292, 7
    %v294 = vsub.s32 0, %v293
    %v295 = vrot.slane %v290, %v294
    %v296 = vlaneseq
    %v297 = vshrl.u32 %v296, 7
    %v298 = vsub.s32 1, %v297
    %v299 = vrot.slane %v290, %v298
    %v306 = vunpack.c.l.b16 %v286
    %v307 = vunpack.c.h.b16 %v286
    %v308 = vunpack.c.l.b16 %v287
    %v309 = vunpack.c.h.b16 %v287
    %v310 = vunpack.c.l.b16 %v288
    %v311 = vunpack.c.h.b16 %v288
    %v312 = vunpack.c.l.b16 %v289
    %v313 = vunpack.c.h.b16 %v289
    %v314 = vpack.c.b16 %v308, %v306
    %v315 = vpack.c.b16 %v309, %v307
    %v316 = vpack.c.b16 %v312, %v310
    %v317 = vpack.c.b16 %v313, %v311
    %v323 = vsel %vm172, %v285, 0
    %325 = vmatprep.subr.bf16.mxu0 %v315
    %326 = vmatpush1.bf16.msra.mxu0 %v314
    %327 = vmatprep.subr.bf16.mxu0 %v317
    %328 = vmatpush1.bf16.msra.mxu0 %v316
    %329 = vmatprep.subr.bf16.mxu0 0
    %330 = vmatpush1.bf16.msra.mxu0 0
    %331 = vmatprep.subr.bf16.mxu0 0
    %332 = vmatpush1.bf16.msra.mxu0 0
    %333 = vmatprep.subr.bf16.mxu0 0
    %334 = vmatpush1.bf16.msra.mxu0 0
    %335 = vmatprep.subr.bf16.mxu0 0
    %336 = vmatpush1.bf16.msra.mxu0 0
    %337 = vmatprep.subr.bf16.mxu0 0
    %338 = vmatpush1.bf16.msra.mxu0 0
    %339 = vmatprep.subr.bf16.mxu0 0
    %340 = vmatpush1.bf16.msra.mxu0 0
    %341 = vmatprep.subr.bf16.mxu0 0
    %342 = vmatpush1.bf16.msra.mxu0 0
    %343 = vmatprep.subr.bf16.mxu0 0
    %344 = vmatpush1.bf16.msra.mxu0 0
    %345 = vmatprep.subr.bf16.mxu0 0
    %346 = vmatpush1.bf16.msra.mxu0 0
    %347 = vmatprep.subr.bf16.mxu0 0
    %348 = vmatpush1.bf16.msra.mxu0 0
    %349 = vmatprep.subr.bf16.mxu0 0
    %350 = vmatpush1.bf16.msra.mxu0 0
    %351 = vmatprep.subr.bf16.mxu0 0
    %352 = vmatpush1.bf16.msra.mxu0 0
    %353 = vmatprep.subr.bf16.mxu0 0
    %354 = vmatpush1.bf16.msra.mxu0 0
    %355 = vmatprep.subr.bf16.mxu0 0
    %356 = vmatpush1.bf16.msra.mxu0 0
    %357 = vmatprep.mubr.bf16.mxu0 0
    %358 = vmatmul.mubr.bf16.gmra.mrb[0].mxu0 %v323
    %v359 = vpop.f32.mrb[0].mxu0
    %v360 = vadd.f32 %v295, %v359
    %v361 = vpop.f32.mrb[0].mxu0
    %v362 = vadd.f32 %v299, %v361
    %v363 = vpop.f32.mrb[0].mxu0
    %v364 = vpop.f32.mrb[0].mxu0
    %365 = vdwg.mxu0
    %v366 = vadd.f32 %v34, %v360
    %v367 = vadd.f32 %v362, 0.0
    %v368 = vpack.c.bf16 %v366, %v366
    %s369 = scalar_lea.vmem %s1, 64
    %v370 = vld [vmem:[%s369] sm:$0xf]
    %v371 = vld [vmem:[%s369 + $0x4] sm:$0xf]
    %v372 = vld [vmem:[%s369 + $0x8] sm:$0xf]
    %v373 = vld [vmem:[%s369 + $0xc] sm:$0xf]
    %v374 = vld [vmem:[%s369 + $0x10] sm:$0xf]
    %v375 = vld [vmem:[%s369 + $0x14] sm:$0xf]
    %v376 = vld [vmem:[%s369 + $0x18] sm:$0xf]
    %v377 = vld [vmem:[%s369 + $0x1c] sm:$0xf]
    %v378 = vld [vmem:[%s369 + $0x20] sm:$0xf]
    %v379 = vld [vmem:[%s369 + $0x24] sm:$0xf]
    %v380 = vld [vmem:[%s369 + $0x28] sm:$0xf]
    %v381 = vld [vmem:[%s369 + $0x2c] sm:$0xf]
    %v382 = vld [vmem:[%s369 + $0x30] sm:$0xf]
    %v383 = vld [vmem:[%s369 + $0x34] sm:$0xf]
    %v384 = vld [vmem:[%s369 + $0x38] sm:$0xf]
    %v385 = vld [vmem:[%s369 + $0x3c] sm:$0xf]
    %s386 = scalar_lea.vmem %s2, 1
    %v387 = vld [vmem:[%s386] sm:$0x1]
    %v389 = vlaneseq
    %v390 = vshrl.u32 %v389, 7
    %v391 = vsub.s32 0, %v390
    %v392 = vrot.slane %v387, %v391
    %v410 = vunpack.c.l.b16 %v370
    %v411 = vunpack.c.l.b16 %v371
    %v412 = vunpack.c.l.b16 %v372
    %v413 = vunpack.c.l.b16 %v373
    %v414 = vunpack.c.l.b16 %v374
    %v415 = vunpack.c.l.b16 %v375
    %v416 = vunpack.c.l.b16 %v376
    %v417 = vunpack.c.l.b16 %v377
    %v418 = vunpack.c.l.b16 %v378
    %v419 = vunpack.c.l.b16 %v379
    %v420 = vunpack.c.l.b16 %v380
    %v421 = vunpack.c.l.b16 %v381
    %v422 = vunpack.c.l.b16 %v382
    %v423 = vunpack.c.l.b16 %v383
    %v424 = vunpack.c.l.b16 %v384
    %v425 = vunpack.c.l.b16 %v385
    %v426 = vpack.c.b16 %v411, %v410
    %v427 = vpack.c.b16 %v413, %v412
    %v428 = vpack.c.b16 %v415, %v414
    %v429 = vpack.c.b16 %v417, %v416
    %v430 = vpack.c.b16 %v419, %v418
    %v431 = vpack.c.b16 %v421, %v420
    %v432 = vpack.c.b16 %v423, %v422
    %v433 = vpack.c.b16 %v425, %v424
    %442 = vmatprep.subr.bf16.mxu0 0
    %443 = vmatpush1.bf16.msra.mxu0 %v426
    %444 = vmatprep.subr.bf16.mxu0 0
    %445 = vmatpush1.bf16.msra.mxu0 %v427
    %446 = vmatprep.subr.bf16.mxu0 0
    %447 = vmatpush1.bf16.msra.mxu0 %v428
    %448 = vmatprep.subr.bf16.mxu0 0
    %449 = vmatpush1.bf16.msra.mxu0 %v429
    %450 = vmatprep.subr.bf16.mxu0 0
    %451 = vmatpush1.bf16.msra.mxu0 %v430
    %452 = vmatprep.subr.bf16.mxu0 0
    %453 = vmatpush1.bf16.msra.mxu0 %v431
    %454 = vmatprep.subr.bf16.mxu0 0
    %455 = vmatpush1.bf16.msra.mxu0 %v432
    %456 = vmatprep.subr.bf16.mxu0 0
    %457 = vmatpush1.bf16.msra.mxu0 %v433
    %458 = vmatprep.subr.bf16.mxu0 0
    %459 = vmatpush1.bf16.msra.mxu0 0
    %460 = vmatprep.subr.bf16.mxu0 0
    %461 = vmatpush1.bf16.msra.mxu0 0
    %462 = vmatprep.subr.bf16.mxu0 0
    %463 = vmatpush1.bf16.msra.mxu0 0
    %464 = vmatprep.subr.bf16.mxu0 0
    %465 = vmatpush1.bf16.msra.mxu0 0
    %466 = vmatprep.subr.bf16.mxu0 0
    %467 = vmatpush1.bf16.msra.mxu0 0
    %468 = vmatprep.subr.bf16.mxu0 0
    %469 = vmatpush1.bf16.msra.mxu0 0
    %470 = vmatprep.subr.bf16.mxu0 0
    %471 = vmatpush1.bf16.msra.mxu0 0
    %472 = vmatprep.subr.bf16.mxu0 0
    %473 = vmatpush1.bf16.msra.mxu0 0
    %474 = vmatprep.mubr.bf16.mxu0 0
    %475 = vmatmul.mubr.bf16.gmra.mrb[0].mxu0 %v368
    %v476 = vpop.f32.mrb[0].mxu0
    %v477 = vadd.f32 %v392, %v476
    %v478 = vpop.f32.mrb[0].mxu0
    %v479 = vpop.f32.mrb[0].mxu0
    %v480 = vpop.f32.mrb[0].mxu0
    %481 = vdwg.mxu0
    %v482 = vmax.f32 %v477, 0.0
    %v483 = vpack.c.bf16 %v482, %v482
    %s484 = scalar_lea.vmem %s3, 16
    %v485 = vld [vmem:[%s484] sm:$0xf]
    %v486 = vld [vmem:[%s484 + $0x4] sm:$0xf]
    %v487 = vld [vmem:[%s484 + $0x8] sm:$0xf]
    %v488 = vld [vmem:[%s484 + $0xc] sm:$0xf]
    %s489 = scalar_lea.vmem %s4, 1
    %v490 = vld [vmem:[%s489] sm:$0x1]
    %v492 = vlaneseq
    %v493 = vshrl.u32 %v492, 7
    %v494 = vsub.s32 0, %v493
    %v495 = vrot.slane %v490, %v494
    %v501 = vunpack.c.l.b16 %v485
    %v502 = vunpack.c.l.b16 %v486
    %v503 = vunpack.c.l.b16 %v487
    %v504 = vunpack.c.l.b16 %v488
    %v505 = vpack.c.b16 %v502, %v501
    %v506 = vpack.c.b16 %v504, %v503
    %v510 = vsel %vm172, %v483, 0
    %512 = vmatprep.subr.bf16.mxu0 0
    %513 = vmatpush1.bf16.msra.mxu0 %v505
    %514 = vmatprep.subr.bf16.mxu0 0
    %515 = vmatpush1.bf16.msra.mxu0 %v506
    %516 = vmatprep.subr.bf16.mxu0 0
    %517 = vmatpush1.bf16.msra.mxu0 0
    %518 = vmatprep.subr.bf16.mxu0 0
    %519 = vmatpush1.bf16.msra.mxu0 0
    %520 = vmatprep.subr.bf16.mxu0 0
    %521 = vmatpush1.bf16.msra.mxu0 0
    %522 = vmatprep.subr.bf16.mxu0 0
    %523 = vmatpush1.bf16.msra.mxu0 0
    %524 = vmatprep.subr.bf16.mxu0 0
    %525 = vmatpush1.bf16.msra.mxu0 0
    %526 = vmatprep.subr.bf16.mxu0 0
    %527 = vmatpush1.bf16.msra.mxu0 0
    %528 = vmatprep.subr.bf16.mxu0 0
    %529 = vmatpush1.bf16.msra.mxu0 0
    %530 = vmatprep.subr.bf16.mxu0 0
    %531 = vmatpush1.bf16.msra.mxu0 0
    %532 = vmatprep.subr.bf16.mxu0 0
    %533 = vmatpush1.bf16.msra.mxu0 0
    %534 = vmatprep.subr.bf16.mxu0 0
    %535 = vmatpush1.bf16.msra.mxu0 0
    %536 = vmatprep.subr.bf16.mxu0 0
    %537 = vmatpush1.bf16.msra.mxu0 0
    %538 = vmatprep.subr.bf16.mxu0 0
    %539 = vmatpush1.bf16.msra.mxu0 0
    %540 = vmatprep.subr.bf16.mxu0 0
    %541 = vmatpush1.bf16.msra.mxu0 0
    %542 = vmatprep.subr.bf16.mxu0 0
    %543 = vmatpush1.bf16.msra.mxu0 0
    %544 = vmatprep.mubr.bf16.mxu0 0
    %545 = vmatmul.mubr.bf16.gmra.mrb[0].mxu0 %v510
    %v546 = vpop.f32.mrb[0].mxu0
    %v547 = vadd.f32 %v495, %v546
    %v548 = vpop.f32.mrb[0].mxu0
    %v549 = vpop.f32.mrb[0].mxu0
    %v550 = vpop.f32.mrb[0].mxu0
    %551 = vdwg.mxu0
    %v552 = vmax.f32 %v547, 0.0
    %v553 = vpack.c.bf16 %v552, %v552
    %s554 = scalar_lea.vmem %s5, 16
    %v555 = vld [vmem:[%s554] sm:$0xf]
    %v556 = vld [vmem:[%s554 + $0x4] sm:$0xf]
    %v557 = vld [vmem:[%s554 + $0x8] sm:$0xf]
    %v558 = vld [vmem:[%s554 + $0xc] sm:$0xf]
    %s559 = scalar_lea.vmem %s6, 1
    %v560 = vld [vmem:[%s559] sm:$0x1]
    %v562 = vlaneseq
    %v563 = vshrl.u32 %v562, 7
    %v564 = vsub.s32 0, %v563
    %v565 = vrot.slane %v560, %v564
    %v571 = vunpack.c.l.b16 %v555
    %v572 = vunpack.c.l.b16 %v556
    %v573 = vunpack.c.l.b16 %v557
    %v574 = vunpack.c.l.b16 %v558
    %v575 = vpack.c.b16 %v572, %v571
    %v576 = vpack.c.b16 %v574, %v573
    %v580 = vsel %vm172, %v553, 0
    %582 = vmatprep.subr.bf16.mxu0 0
    %583 = vmatpush1.bf16.msra.mxu0 %v575
    %584 = vmatprep.subr.bf16.mxu0 0
    %585 = vmatpush1.bf16.msra.mxu0 %v576
    %586 = vmatprep.subr.bf16.mxu0 0
    %587 = vmatpush1.bf16.msra.mxu0 0
    %588 = vmatprep.subr.bf16.mxu0 0
    %589 = vmatpush1.bf16.msra.mxu0 0
    %590 = vmatprep.subr.bf16.mxu0 0
    %591 = vmatpush1.bf16.msra.mxu0 0
    %592 = vmatprep.subr.bf16.mxu0 0
    %593 = vmatpush1.bf16.msra.mxu0 0
    %594 = vmatprep.subr.bf16.mxu0 0
    %595 = vmatpush1.bf16.msra.mxu0 0
    %596 = vmatprep.subr.bf16.mxu0 0
    %597 = vmatpush1.bf16.msra.mxu0 0
    %598 = vmatprep.subr.bf16.mxu0 0
    %599 = vmatpush1.bf16.msra.mxu0 0
    %600 = vmatprep.subr.bf16.mxu0 0
    %601 = vmatpush1.bf16.msra.mxu0 0
    %602 = vmatprep.subr.bf16.mxu0 0
    %603 = vmatpush1.bf16.msra.mxu0 0
    %604 = vmatprep.subr.bf16.mxu0 0
    %605 = vmatpush1.bf16.msra.mxu0 0
    %606 = vmatprep.subr.bf16.mxu0 0
    %607 = vmatpush1.bf16.msra.mxu0 0
    %608 = vmatprep.subr.bf16.mxu0 0
    %609 = vmatpush1.bf16.msra.mxu0 0
    %610 = vmatprep.subr.bf16.mxu0 0
    %611 = vmatpush1.bf16.msra.mxu0 0
    %612 = vmatprep.subr.bf16.mxu0 0
    %613 = vmatpush1.bf16.msra.mxu0 0
    %614 = vmatprep.mubr.bf16.mxu0 0
    %615 = vmatmul.mubr.bf16.gmra.mrb[0].mxu0 %v580
    %v616 = vpop.f32.mrb[0].mxu0
    %v617 = vadd.f32 %v565, %v616
    %v618 = vpop.f32.mrb[0].mxu0
    %v619 = vpop.f32.mrb[0].mxu0
    %v620 = vpop.f32.mrb[0].mxu0
    %621 = vdwg.mxu0
    %v622 = vmax.f32 %v617, 0.0
    %v623 = vpack.c.bf16 %v622, %v622
    %s624 = scalar_lea.vmem %s7, 32
    %v625 = vld [vmem:[%s624] sm:$0xff]
    %v626 = vld [vmem:[%s624 + $0x8] sm:$0xff]
    %v627 = vld [vmem:[%s624 + $0x10] sm:$0xff]
    %v628 = vld [vmem:[%s624 + $0x18] sm:$0xff]
    %s629 = scalar_lea.vmem %s8, 2
    %v630 = vld [vmem:[%s629] sm:$0x3]
    %v632 = vlaneseq
    %v633 = vshrl.u32 %v632, 7
    %v634 = vsub.s32 0, %v633
    %v635 = vrot.slane %v630, %v634
    %v636 = vlaneseq
    %v637 = vshrl.u32 %v636, 7
    %v638 = vsub.s32 1, %v637
    %v639 = vrot.slane %v630, %v638
    %v646 = vunpack.c.l.b16 %v625
    %v647 = vunpack.c.h.b16 %v625
    %v648 = vunpack.c.l.b16 %v626
    %v649 = vunpack.c.h.b16 %v626
    %v650 = vunpack.c.l.b16 %v627
    %v651 = vunpack.c.h.b16 %v627
    %v652 = vunpack.c.l.b16 %v628
    %v653 = vunpack.c.h.b16 %v628
    %v654 = vpack.c.b16 %v648, %v646
    %v655 = vpack.c.b16 %v649, %v647
    %v656 = vpack.c.b16 %v652, %v650
    %v657 = vpack.c.b16 %v653, %v651
    %v663 = vsel %vm172, %v623, 0
    %665 = vmatprep.subr.bf16.mxu0 %v655
    %666 = vmatpush1.bf16.msra.mxu0 %v654
    %667 = vmatprep.subr.bf16.mxu0 %v657
    %668 = vmatpush1.bf16.msra.mxu0 %v656
    %669 = vmatprep.subr.bf16.mxu0 0
    %670 = vmatpush1.bf16.msra.mxu0 0
    %671 = vmatprep.subr.bf16.mxu0 0
    %672 = vmatpush1.bf16.msra.mxu0 0
    %673 = vmatprep.subr.bf16.mxu0 0
    %674 = vmatpush1.bf16.msra.mxu0 0
    %675 = vmatprep.subr.bf16.mxu0 0
    %676 = vmatpush1.bf16.msra.mxu0 0
    %677 = vmatprep.subr.bf16.mxu0 0
    %678 = vmatpush1.bf16.msra.mxu0 0
    %679 = vmatprep.subr.bf16.mxu0 0
    %680 = vmatpush1.bf16.msra.mxu0 0
    %681 = vmatprep.subr.bf16.mxu0 0
    %682 = vmatpush1.bf16.msra.mxu0 0
    %683 = vmatprep.subr.bf16.mxu0 0
    %684 = vmatpush1.bf16.msra.mxu0 0
    %685 = vmatprep.subr.bf16.mxu0 0
    %686 = vmatpush1.bf16.msra.mxu0 0
    %687 = vmatprep.subr.bf16.mxu0 0
    %688 = vmatpush1.bf16.msra.mxu0 0
    %689 = vmatprep.subr.bf16.mxu0 0
    %690 = vmatpush1.bf16.msra.mxu0 0
    %691 = vmatprep.subr.bf16.mxu0 0
    %692 = vmatpush1.bf16.msra.mxu0 0
    %693 = vmatprep.subr.bf16.mxu0 0
    %694 = vmatpush1.bf16.msra.mxu0 0
    %695 = vmatprep.subr.bf16.mxu0 0
    %696 = vmatpush1.bf16.msra.mxu0 0
    %697 = vmatprep.mubr.bf16.mxu0 0
    %698 = vmatmul.mubr.bf16.gmra.mrb[0].mxu0 %v663
    %v699 = vpop.f32.mrb[0].mxu0
    %v700 = vadd.f32 %v635, %v699
    %v701 = vpop.f32.mrb[0].mxu0
    %v702 = vadd.f32 %v639, %v701
    %v703 = vpop.f32.mrb[0].mxu0
    %v704 = vpop.f32.mrb[0].mxu0
    %705 = vdwg.mxu0
    %v706 = vadd.f32 %v366, %v700
    %v707 = vadd.f32 %v367, %v702
    %v708 = vpack.c.bf16 %v706, %v706
    %s709 = scalar_lea.vmem %s1, 128
    %v710 = vld [vmem:[%s709] sm:$0xf]
    %v711 = vld [vmem:[%s709 + $0x4] sm:$0xf]
    %v712 = vld [vmem:[%s709 + $0x8] sm:$0xf]
    %v713 = vld [vmem:[%s709 + $0xc] sm:$0xf]
    %v714 = vld [vmem:[%s709 + $0x10] sm:$0xf]
    %v715 = vld [vmem:[%s709 + $0x14] sm:$0xf]
    %v716 = vld [vmem:[%s709 + $0x18] sm:$0xf]
    %v717 = vld [vmem:[%s709 + $0x1c] sm:$0xf]
    %v718 = vld [vmem:[%s709 + $0x20] sm:$0xf]
    %v719 = vld [vmem:[%s709 + $0x24] sm:$0xf]
    %v720 = vld [vmem:[%s709 + $0x28] sm:$0xf]
    %v721 = vld [vmem:[%s709 + $0x2c] sm:$0xf]
    %v722 = vld [vmem:[%s709 + $0x30] sm:$0xf]
    %v723 = vld [vmem:[%s709 + $0x34] sm:$0xf]
    %v724 = vld [vmem:[%s709 + $0x38] sm:$0xf]
    %v725 = vld [vmem:[%s709 + $0x3c] sm:$0xf]
    %s726 = scalar_lea.vmem %s2, 2
    %v727 = vld [vmem:[%s726] sm:$0x1]
    %v729 = vlaneseq
    %v730 = vshrl.u32 %v729, 7
    %v731 = vsub.s32 0, %v730
    %v732 = vrot.slane %v727, %v731
    %v750 = vunpack.c.l.b16 %v710
    %v751 = vunpack.c.l.b16 %v711
    %v752 = vunpack.c.l.b16 %v712
    %v753 = vunpack.c.l.b16 %v713
    %v754 = vunpack.c.l.b16 %v714
    %v755 = vunpack.c.l.b16 %v715
    %v756 = vunpack.c.l.b16 %v716
    %v757 = vunpack.c.l.b16 %v717
    %v758 = vunpack.c.l.b16 %v718
    %v759 = vunpack.c.l.b16 %v719
    %v760 = vunpack.c.l.b16 %v720
    %v761 = vunpack.c.l.b16 %v721
    %v762 = vunpack.c.l.b16 %v722
    %v763 = vunpack.c.l.b16 %v723
    %v764 = vunpack.c.l.b16 %v724
    %v765 = vunpack.c.l.b16 %v725
    %v766 = vpack.c.b16 %v751, %v750
    %v767 = vpack.c.b16 %v753, %v752
    %v768 = vpack.c.b16 %v755, %v754
    %v769 = vpack.c.b16 %v757, %v756
    %v770 = vpack.c.b16 %v759, %v758
    %v771 = vpack.c.b16 %v761, %v760
    %v772 = vpack.c.b16 %v763, %v762
    %v773 = vpack.c.b16 %v765, %v764
    %782 = vmatprep.subr.bf16.mxu0 0
    %783 = vmatpush1.bf16.msra.mxu0 %v766
    %784 = vmatprep.subr.bf16.mxu0 0
    %785 = vmatpush1.bf16.msra.mxu0 %v767
    %786 = vmatprep.subr.bf16.mxu0 0
    %787 = vmatpush1.bf16.msra.mxu0 %v768
    %788 = vmatprep.subr.bf16.mxu0 0
    %789 = vmatpush1.bf16.msra.mxu0 %v769
    %790 = vmatprep.subr.bf16.mxu0 0
    %791 = vmatpush1.bf16.msra.mxu0 %v770
    %792 = vmatprep.subr.bf16.mxu0 0
    %793 = vmatpush1.bf16.msra.mxu0 %v771
    %794 = vmatprep.subr.bf16.mxu0 0
    %795 = vmatpush1.bf16.msra.mxu0 %v772
    %796 = vmatprep.subr.bf16.mxu0 0
    %797 = vmatpush1.bf16.msra.mxu0 %v773
    %798 = vmatprep.subr.bf16.mxu0 0
    %799 = vmatpush1.bf16.msra.mxu0 0
    %800 = vmatprep.subr.bf16.mxu0 0
    %801 = vmatpush1.bf16.msra.mxu0 0
    %802 = vmatprep.subr.bf16.mxu0 0
    %803 = vmatpush1.bf16.msra.mxu0 0
    %804 = vmatprep.subr.bf16.mxu0 0
    %805 = vmatpush1.bf16.msra.mxu0 0
    %806 = vmatprep.subr.bf16.mxu0 0
    %807 = vmatpush1.bf16.msra.mxu0 0
    %808 = vmatprep.subr.bf16.mxu0 0
    %809 = vmatpush1.bf16.msra.mxu0 0
    %810 = vmatprep.subr.bf16.mxu0 0
    %811 = vmatpush1.bf16.msra.mxu0 0
    %812 = vmatprep.subr.bf16.mxu0 0
    %813 = vmatpush1.bf16.msra.mxu0 0
    %814 = vmatprep.mubr.bf16.mxu0 0
    %815 = vmatmul.mubr.bf16.gmra.mrb[0].mxu0 %v708
    %v816 = vpop.f32.mrb[0].mxu0
    %v817 = vadd.f32 %v732, %v816
    %v818 = vpop.f32.mrb[0].mxu0
    %v819 = vpop.f32.mrb[0].mxu0
    %v820 = vpop.f32.mrb[0].mxu0
    %821 = vdwg.mxu0
    %v822 = vmax.f32 %v817, 0.0
    %v823 = vpack.c.bf16 %v822, %v822
    %s824 = scalar_lea.vmem %s3, 32
    %v825 = vld [vmem:[%s824] sm:$0xf]
    %v826 = vld [vmem:[%s824 + $0x4] sm:$0xf]
    %v827 = vld [vmem:[%s824 + $0x8] sm:$0xf]
    %v828 = vld [vmem:[%s824 + $0xc] sm:$0xf]
    %s829 = scalar_lea.vmem %s4, 2
    %v830 = vld [vmem:[%s829] sm:$0x1]
    %v832 = vlaneseq
    %v833 = vshrl.u32 %v832, 7
    %v834 = vsub.s32 0, %v833
    %v835 = vrot.slane %v830, %v834
    %v841 = vunpack.c.l.b16 %v825
    %v842 = vunpack.c.l.b16 %v826
    %v843 = vunpack.c.l.b16 %v827
    %v844 = vunpack.c.l.b16 %v828
    %v845 = vpack.c.b16 %v842, %v841
    %v846 = vpack.c.b16 %v844, %v843
    %v850 = vsel %vm172, %v823, 0
    %852 = vmatprep.subr.bf16.mxu0 0
    %853 = vmatpush1.bf16.msra.mxu0 %v845
    %854 = vmatprep.subr.bf16.mxu0 0
    %855 = vmatpush1.bf16.msra.mxu0 %v846
    %856 = vmatprep.subr.bf16.mxu0 0
    %857 = vmatpush1.bf16.msra.mxu0 0
    %858 = vmatprep.subr.bf16.mxu0 0
    %859 = vmatpush1.bf16.msra.mxu0 0
    %860 = vmatprep.subr.bf16.mxu0 0
    %861 = vmatpush1.bf16.msra.mxu0 0
    %862 = vmatprep.subr.bf16.mxu0 0
    %863 = vmatpush1.bf16.msra.mxu0 0
    %864 = vmatprep.subr.bf16.mxu0 0
    %865 = vmatpush1.bf16.msra.mxu0 0
    %866 = vmatprep.subr.bf16.mxu0 0
    %867 = vmatpush1.bf16.msra.mxu0 0
    %868 = vmatprep.subr.bf16.mxu0 0
    %869 = vmatpush1.bf16.msra.mxu0 0
    %870 = vmatprep.subr.bf16.mxu0 0
    %871 = vmatpush1.bf16.msra.mxu0 0
    %872 = vmatprep.subr.bf16.mxu0 0
    %873 = vmatpush1.bf16.msra.mxu0 0
    %874 = vmatprep.subr.bf16.mxu0 0
    %875 = vmatpush1.bf16.msra.mxu0 0
    %876 = vmatprep.subr.bf16.mxu0 0
    %877 = vmatpush1.bf16.msra.mxu0 0
    %878 = vmatprep.subr.bf16.mxu0 0
    %879 = vmatpush1.bf16.msra.mxu0 0
    %880 = vmatprep.subr.bf16.mxu0 0
    %881 = vmatpush1.bf16.msra.mxu0 0
    %882 = vmatprep.subr.bf16.mxu0 0
    %883 = vmatpush1.bf16.msra.mxu0 0
    %884 = vmatprep.mubr.bf16.mxu0 0
    %885 = vmatmul.mubr.bf16.gmra.mrb[0].mxu0 %v850
    %v886 = vpop.f32.mrb[0].mxu0
    %v887 = vadd.f32 %v835, %v886
    %v888 = vpop.f32.mrb[0].mxu0
    %v889 = vpop.f32.mrb[0].mxu0
    %v890 = vpop.f32.mrb[0].mxu0
    %891 = vdwg.mxu0
    %v892 = vmax.f32 %v887, 0.0
    %v893 = vpack.c.bf16 %v892, %v892
    %s894 = scalar_lea.vmem %s5, 32
    %v895 = vld [vmem:[%s894] sm:$0xf]
    %v896 = vld [vmem:[%s894 + $0x4] sm:$0xf]
    %v897 = vld [vmem:[%s894 + $0x8] sm:$0xf]
    %v898 = vld [vmem:[%s894 + $0xc] sm:$0xf]
    %s899 = scalar_lea.vmem %s6, 2
    %v900 = vld [vmem:[%s899] sm:$0x1]
    %v902 = vlaneseq
    %v903 = vshrl.u32 %v902, 7
    %v904 = vsub.s32 0, %v903
    %v905 = vrot.slane %v900, %v904
    %v911 = vunpack.c.l.b16 %v895
    %v912 = vunpack.c.l.b16 %v896
    %v913 = vunpack.c.l.b16 %v897
    %v914 = vunpack.c.l.b16 %v898
    %v915 = vpack.c.b16 %v912, %v911
    %v916 = vpack.c.b16 %v914, %v913
    %v920 = vsel %vm172, %v893, 0
    %922 = vmatprep.subr.bf16.mxu0 0
    %923 = vmatpush1.bf16.msra.mxu0 %v915
    %924 = vmatprep.subr.bf16.mxu0 0
    %925 = vmatpush1.bf16.msra.mxu0 %v916
    %926 = vmatprep.subr.bf16.mxu0 0
    %927 = vmatpush1.bf16.msra.mxu0 0
    %928 = vmatprep.subr.bf16.mxu0 0
    %929 = vmatpush1.bf16.msra.mxu0 0
    %930 = vmatprep.subr.bf16.mxu0 0
    %931 = vmatpush1.bf16.msra.mxu0 0
    %932 = vmatprep.subr.bf16.mxu0 0
    %933 = vmatpush1.bf16.msra.mxu0 0
    %934 = vmatprep.subr.bf16.mxu0 0
    %935 = vmatpush1.bf16.msra.mxu0 0
    %936 = vmatprep.subr.bf16.mxu0 0
    %937 = vmatpush1.bf16.msra.mxu0 0
    %938 = vmatprep.subr.bf16.mxu0 0
    %939 = vmatpush1.bf16.msra.mxu0 0
    %940 = vmatprep.subr.bf16.mxu0 0
    %941 = vmatpush1.bf16.msra.mxu0 0
    %942 = vmatprep.subr.bf16.mxu0 0
    %943 = vmatpush1.bf16.msra.mxu0 0
    %944 = vmatprep.subr.bf16.mxu0 0
    %945 = vmatpush1.bf16.msra.mxu0 0
    %946 = vmatprep.subr.bf16.mxu0 0
    %947 = vmatpush1.bf16.msra.mxu0 0
    %948 = vmatprep.subr.bf16.mxu0 0
    %949 = vmatpush1.bf16.msra.mxu0 0
    %950 = vmatprep.subr.bf16.mxu0 0
    %951 = vmatpush1.bf16.msra.mxu0 0
    %952 = vmatprep.subr.bf16.mxu0 0
    %953 = vmatpush1.bf16.msra.mxu0 0
    %954 = vmatprep.mubr.bf16.mxu0 0
    %955 = vmatmul.mubr.bf16.gmra.mrb[0].mxu0 %v920
    %v956 = vpop.f32.mrb[0].mxu0
    %v957 = vadd.f32 %v905, %v956
    %v958 = vpop.f32.mrb[0].mxu0
    %v959 = vpop.f32.mrb[0].mxu0
    %v960 = vpop.f32.mrb[0].mxu0
    %961 = vdwg.mxu0
    %v962 = vmax.f32 %v957, 0.0
    %v963 = vpack.c.bf16 %v962, %v962
    %s964 = scalar_lea.vmem %s7, 64
    %v965 = vld [vmem:[%s964] sm:$0xff]
    %v966 = vld [vmem:[%s964 + $0x8] sm:$0xff]
    %v967 = vld [vmem:[%s964 + $0x10] sm:$0xff]
    %v968 = vld [vmem:[%s964 + $0x18] sm:$0xff]
    %s969 = scalar_lea.vmem %s8, 4
    %v970 = vld [vmem:[%s969] sm:$0x3]
    %v972 = vlaneseq
    %v973 = vshrl.u32 %v972, 7
    %v974 = vsub.s32 0, %v973
    %v975 = vrot.slane %v970, %v974
    %v976 = vlaneseq
    %v977 = vshrl.u32 %v976, 7
    %v978 = vsub.s32 1, %v977
    %v979 = vrot.slane %v970, %v978
    %v986 = vunpack.c.l.b16 %v965
    %v987 = vunpack.c.h.b16 %v965
    %v988 = vunpack.c.l.b16 %v966
    %v989 = vunpack.c.h.b16 %v966
    %v990 = vunpack.c.l.b16 %v967
    %v991 = vunpack.c.h.b16 %v967
    %v992 = vunpack.c.l.b16 %v968
    %v993 = vunpack.c.h.b16 %v968
    %v994 = vpack.c.b16 %v988, %v986
    %v995 = vpack.c.b16 %v989, %v987
    %v996 = vpack.c.b16 %v992, %v990
    %v997 = vpack.c.b16 %v993, %v991
    %v1003 = vsel %vm172, %v963, 0
    %1005 = vmatprep.subr.bf16.mxu0 %v995
    %1006 = vmatpush1.bf16.msra.mxu0 %v994
    %1007 = vmatprep.subr.bf16.mxu0 %v997
    %1008 = vmatpush1.bf16.msra.mxu0 %v996
    %1009 = vmatprep.subr.bf16.mxu0 0
    %1010 = vmatpush1.bf16.msra.mxu0 0
    %1011 = vmatprep.subr.bf16.mxu0 0
    %1012 = vmatpush1.bf16.msra.mxu0 0
    %1013 = vmatprep.subr.bf16.mxu0 0
    %1014 = vmatpush1.bf16.msra.mxu0 0
    %1015 = vmatprep.subr.bf16.mxu0 0
    %1016 = vmatpush1.bf16.msra.mxu0 0
    %1017 = vmatprep.subr.bf16.mxu0 0
    %1018 = vmatpush1.bf16.msra.mxu0 0
    %1019 = vmatprep.subr.bf16.mxu0 0
    %1020 = vmatpush1.bf16.msra.mxu0 0
    %1021 = vmatprep.subr.bf16.mxu0 0
    %1022 = vmatpush1.bf16.msra.mxu0 0
    %1023 = vmatprep.subr.bf16.mxu0 0
    %1024 = vmatpush1.bf16.msra.mxu0 0
    %1025 = vmatprep.subr.bf16.mxu0 0
    %1026 = vmatpush1.bf16.msra.mxu0 0
    %1027 = vmatprep.subr.bf16.mxu0 0
    %1028 = vmatpush1.bf16.msra.mxu0 0
    %1029 = vmatprep.subr.bf16.mxu0 0
    %1030 = vmatpush1.bf16.msra.mxu0 0
    %1031 = vmatprep.subr.bf16.mxu0 0
    %1032 = vmatpush1.bf16.msra.mxu0 0
    %1033 = vmatprep.subr.bf16.mxu0 0
    %1034 = vmatpush1.bf16.msra.mxu0 0
    %1035 = vmatprep.subr.bf16.mxu0 0
    %1036 = vmatpush1.bf16.msra.mxu0 0
    %1037 = vmatprep.mubr.bf16.mxu0 0
    %1038 = vmatmul.mubr.bf16.gmra.mrb[0].mxu0 %v1003
    %v1039 = vpop.f32.mrb[0].mxu0
    %v1040 = vadd.f32 %v975, %v1039
    %v1041 = vpop.f32.mrb[0].mxu0
    %v1042 = vadd.f32 %v979, %v1041
    %v1043 = vpop.f32.mrb[0].mxu0
    %v1044 = vpop.f32.mrb[0].mxu0
    %1045 = vdwg.mxu0
    %v1046 = vadd.f32 %v706, %v1040
    %v1047 = vadd.f32 %v707, %v1042
    %v1048 = vpack.c.bf16 %v1046, %v1046
    %s1049 = scalar_lea.vmem %s1, 192
    %v1050 = vld [vmem:[%s1049] sm:$0xf]
    %v1051 = vld [vmem:[%s1049 + $0x4] sm:$0xf]
    %v1052 = vld [vmem:[%s1049 + $0x8] sm:$0xf]
    %v1053 = vld [vmem:[%s1049 + $0xc] sm:$0xf]
    %v1054 = vld [vmem:[%s1049 + $0x10] sm:$0xf]
    %v1055 = vld [vmem:[%s1049 + $0x14] sm:$0xf]
    %v1056 = vld [vmem:[%s1049 + $0x18] sm:$0xf]
    %v1057 = vld [vmem:[%s1049 + $0x1c] sm:$0xf]
    %v1058 = vld [vmem:[%s1049 + $0x20] sm:$0xf]
    %v1059 = vld [vmem:[%s1049 + $0x24] sm:$0xf]
    %v1060 = vld [vmem:[%s1049 + $0x28] sm:$0xf]
    %v1061 = vld [vmem:[%s1049 + $0x2c] sm:$0xf]
    %v1062 = vld [vmem:[%s1049 + $0x30] sm:$0xf]
    %v1063 = vld [vmem:[%s1049 + $0x34] sm:$0xf]
    %v1064 = vld [vmem:[%s1049 + $0x38] sm:$0xf]
    %v1065 = vld [vmem:[%s1049 + $0x3c] sm:$0xf]
    %s1066 = scalar_lea.vmem %s2, 3
    %v1067 = vld [vmem:[%s1066] sm:$0x1]
    %v1069 = vlaneseq
    %v1070 = vshrl.u32 %v1069, 7
    %v1071 = vsub.s32 0, %v1070
    %v1072 = vrot.slane %v1067, %v1071
    %v1090 = vunpack.c.l.b16 %v1050
    %v1091 = vunpack.c.l.b16 %v1051
    %v1092 = vunpack.c.l.b16 %v1052
    %v1093 = vunpack.c.l.b16 %v1053
    %v1094 = vunpack.c.l.b16 %v1054
    %v1095 = vunpack.c.l.b16 %v1055
    %v1096 = vunpack.c.l.b16 %v1056
    %v1097 = vunpack.c.l.b16 %v1057
    %v1098 = vunpack.c.l.b16 %v1058
    %v1099 = vunpack.c.l.b16 %v1059
    %v1100 = vunpack.c.l.b16 %v1060
    %v1101 = vunpack.c.l.b16 %v1061
    %v1102 = vunpack.c.l.b16 %v1062
    %v1103 = vunpack.c.l.b16 %v1063
    %v1104 = vunpack.c.l.b16 %v1064
    %v1105 = vunpack.c.l.b16 %v1065
    %v1106 = vpack.c.b16 %v1091, %v1090
    %v1107 = vpack.c.b16 %v1093, %v1092
    %v1108 = vpack.c.b16 %v1095, %v1094
    %v1109 = vpack.c.b16 %v1097, %v1096
    %v1110 = vpack.c.b16 %v1099, %v1098
    %v1111 = vpack.c.b16 %v1101, %v1100
    %v1112 = vpack.c.b16 %v1103, %v1102
    %v1113 = vpack.c.b16 %v1105, %v1104
    %1122 = vmatprep.subr.bf16.mxu0 0
    %1123 = vmatpush1.bf16.msra.mxu0 %v1106
    %1124 = vmatprep.subr.bf16.mxu0 0
    %1125 = vmatpush1.bf16.msra.mxu0 %v1107
    %1126 = vmatprep.subr.bf16.mxu0 0
    %1127 = vmatpush1.bf16.msra.mxu0 %v1108
    %1128 = vmatprep.subr.bf16.mxu0 0
    %1129 = vmatpush1.bf16.msra.mxu0 %v1109
    %1130 = vmatprep.subr.bf16.mxu0 0
    %1131 = vmatpush1.bf16.msra.mxu0 %v1110
    %1132 = vmatprep.subr.bf16.mxu0 0
    %1133 = vmatpush1.bf16.msra.mxu0 %v1111
    %1134 = vmatprep.subr.bf16.mxu0 0
    %1135 = vmatpush1.bf16.msra.mxu0 %v1112
    %1136 = vmatprep.subr.bf16.mxu0 0
    %1137 = vmatpush1.bf16.msra.mxu0 %v1113
    %1138 = vmatprep.subr.bf16.mxu0 0
    %1139 = vmatpush1.bf16.msra.mxu0 0
    %1140 = vmatprep.subr.bf16.mxu0 0
    %1141 = vmatpush1.bf16.msra.mxu0 0
    %1142 = vmatprep.subr.bf16.mxu0 0
    %1143 = vmatpush1.bf16.msra.mxu0 0
    %1144 = vmatprep.subr.bf16.mxu0 0
    %1145 = vmatpush1.bf16.msra.mxu0 0
    %1146 = vmatprep.subr.bf16.mxu0 0
    %1147 = vmatpush1.bf16.msra.mxu0 0
    %1148 = vmatprep.subr.bf16.mxu0 0
    %1149 = vmatpush1.bf16.msra.mxu0 0
    %1150 = vmatprep.subr.bf16.mxu0 0
    %1151 = vmatpush1.bf16.msra.mxu0 0
    %1152 = vmatprep.subr.bf16.mxu0 0
    %1153 = vmatpush1.bf16.msra.mxu0 0
    %1154 = vmatprep.mubr.bf16.mxu0 0
    %1155 = vmatmul.mubr.bf16.gmra.mrb[0].mxu0 %v1048
    %v1156 = vpop.f32.mrb[0].mxu0
    %v1157 = vadd.f32 %v1072, %v1156
    %v1158 = vpop.f32.mrb[0].mxu0
    %v1159 = vpop.f32.mrb[0].mxu0
    %v1160 = vpop.f32.mrb[0].mxu0
    %1161 = vdwg.mxu0
    %v1162 = vmax.f32 %v1157, 0.0
    %v1163 = vpack.c.bf16 %v1162, %v1162
    %s1164 = scalar_lea.vmem %s3, 48
    %v1165 = vld [vmem:[%s1164] sm:$0xf]
    %v1166 = vld [vmem:[%s1164 + $0x4] sm:$0xf]
    %v1167 = vld [vmem:[%s1164 + $0x8] sm:$0xf]
    %v1168 = vld [vmem:[%s1164 + $0xc] sm:$0xf]
    %s1169 = scalar_lea.vmem %s4, 3
    %v1170 = vld [vmem:[%s1169] sm:$0x1]
    %v1172 = vlaneseq
    %v1173 = vshrl.u32 %v1172, 7
    %v1174 = vsub.s32 0, %v1173
    %v1175 = vrot.slane %v1170, %v1174
    %v1181 = vunpack.c.l.b16 %v1165
    %v1182 = vunpack.c.l.b16 %v1166
    %v1183 = vunpack.c.l.b16 %v1167
    %v1184 = vunpack.c.l.b16 %v1168
    %v1185 = vpack.c.b16 %v1182, %v1181
    %v1186 = vpack.c.b16 %v1184, %v1183
    %v1190 = vsel %vm172, %v1163, 0
    %1192 = vmatprep.subr.bf16.mxu0 0
    %1193 = vmatpush1.bf16.msra.mxu0 %v1185
    %1194 = vmatprep.subr.bf16.mxu0 0
    %1195 = vmatpush1.bf16.msra.mxu0 %v1186
    %1196 = vmatprep.subr.bf16.mxu0 0
    %1197 = vmatpush1.bf16.msra.mxu0 0
    %1198 = vmatprep.subr.bf16.mxu0 0
    %1199 = vmatpush1.bf16.msra.mxu0 0
    %1200 = vmatprep.subr.bf16.mxu0 0
    %1201 = vmatpush1.bf16.msra.mxu0 0
    %1202 = vmatprep.subr.bf16.mxu0 0
    %1203 = vmatpush1.bf16.msra.mxu0 0
    %1204 = vmatprep.subr.bf16.mxu0 0
    %1205 = vmatpush1.bf16.msra.mxu0 0
    %1206 = vmatprep.subr.bf16.mxu0 0
    %1207 = vmatpush1.bf16.msra.mxu0 0
    %1208 = vmatprep.subr.bf16.mxu0 0
    %1209 = vmatpush1.bf16.msra.mxu0 0
    %1210 = vmatprep.subr.bf16.mxu0 0
    %1211 = vmatpush1.bf16.msra.mxu0 0
    %1212 = vmatprep.subr.bf16.mxu0 0
    %1213 = vmatpush1.bf16.msra.mxu0 0
    %1214 = vmatprep.subr.bf16.mxu0 0
    %1215 = vmatpush1.bf16.msra.mxu0 0
    %1216 = vmatprep.subr.bf16.mxu0 0
    %1217 = vmatpush1.bf16.msra.mxu0 0
    %1218 = vmatprep.subr.bf16.mxu0 0
    %1219 = vmatpush1.bf16.msra.mxu0 0
    %1220 = vmatprep.subr.bf16.mxu0 0
    %1221 = vmatpush1.bf16.msra.mxu0 0
    %1222 = vmatprep.subr.bf16.mxu0 0
    %1223 = vmatpush1.bf16.msra.mxu0 0
    %1224 = vmatprep.mubr.bf16.mxu0 0
    %1225 = vmatmul.mubr.bf16.gmra.mrb[0].mxu0 %v1190
    %v1226 = vpop.f32.mrb[0].mxu0
    %v1227 = vadd.f32 %v1175, %v1226
    %v1228 = vpop.f32.mrb[0].mxu0
    %v1229 = vpop.f32.mrb[0].mxu0
    %v1230 = vpop.f32.mrb[0].mxu0
    %1231 = vdwg.mxu0
    %v1232 = vmax.f32 %v1227, 0.0
    %v1233 = vpack.c.bf16 %v1232, %v1232
    %s1234 = scalar_lea.vmem %s5, 48
    %v1235 = vld [vmem:[%s1234] sm:$0xf]
    %v1236 = vld [vmem:[%s1234 + $0x4] sm:$0xf]
    %v1237 = vld [vmem:[%s1234 + $0x8] sm:$0xf]
    %v1238 = vld [vmem:[%s1234 + $0xc] sm:$0xf]
    %s1239 = scalar_lea.vmem %s6, 3
    %v1240 = vld [vmem:[%s1239] sm:$0x1]
    %v1242 = vlaneseq
    %v1243 = vshrl.u32 %v1242, 7
    %v1244 = vsub.s32 0, %v1243
    %v1245 = vrot.slane %v1240, %v1244
    %v1251 = vunpack.c.l.b16 %v1235
    %v1252 = vunpack.c.l.b16 %v1236
    %v1253 = vunpack.c.l.b16 %v1237
    %v1254 = vunpack.c.l.b16 %v1238
    %v1255 = vpack.c.b16 %v1252, %v1251
    %v1256 = vpack.c.b16 %v1254, %v1253
    %v1260 = vsel %vm172, %v1233, 0
    %1262 = vmatprep.subr.bf16.mxu0 0
    %1263 = vmatpush1.bf16.msra.mxu0 %v1255
    %1264 = vmatprep.subr.bf16.mxu0 0
    %1265 = vmatpush1.bf16.msra.mxu0 %v1256
    %1266 = vmatprep.subr.bf16.mxu0 0
    %1267 = vmatpush1.bf16.msra.mxu0 0
    %1268 = vmatprep.subr.bf16.mxu0 0
    %1269 = vmatpush1.bf16.msra.mxu0 0
    %1270 = vmatprep.subr.bf16.mxu0 0
    %1271 = vmatpush1.bf16.msra.mxu0 0
    %1272 = vmatprep.subr.bf16.mxu0 0
    %1273 = vmatpush1.bf16.msra.mxu0 0
    %1274 = vmatprep.subr.bf16.mxu0 0
    %1275 = vmatpush1.bf16.msra.mxu0 0
    %1276 = vmatprep.subr.bf16.mxu0 0
    %1277 = vmatpush1.bf16.msra.mxu0 0
    %1278 = vmatprep.subr.bf16.mxu0 0
    %1279 = vmatpush1.bf16.msra.mxu0 0
    %1280 = vmatprep.subr.bf16.mxu0 0
    %1281 = vmatpush1.bf16.msra.mxu0 0
    %1282 = vmatprep.subr.bf16.mxu0 0
    %1283 = vmatpush1.bf16.msra.mxu0 0
    %1284 = vmatprep.subr.bf16.mxu0 0
    %1285 = vmatpush1.bf16.msra.mxu0 0
    %1286 = vmatprep.subr.bf16.mxu0 0
    %1287 = vmatpush1.bf16.msra.mxu0 0
    %1288 = vmatprep.subr.bf16.mxu0 0
    %1289 = vmatpush1.bf16.msra.mxu0 0
    %1290 = vmatprep.subr.bf16.mxu0 0
    %1291 = vmatpush1.bf16.msra.mxu0 0
    %1292 = vmatprep.subr.bf16.mxu0 0
    %1293 = vmatpush1.bf16.msra.mxu0 0
    %1294 = vmatprep.mubr.bf16.mxu0 0
    %1295 = vmatmul.mubr.bf16.gmra.mrb[0].mxu0 %v1260
    %v1296 = vpop.f32.mrb[0].mxu0
    %v1297 = vadd.f32 %v1245, %v1296
    %v1298 = vpop.f32.mrb[0].mxu0
    %v1299 = vpop.f32.mrb[0].mxu0
    %v1300 = vpop.f32.mrb[0].mxu0
    %1301 = vdwg.mxu0
    %v1302 = vmax.f32 %v1297, 0.0
    %v1303 = vpack.c.bf16 %v1302, %v1302
    %s1304 = scalar_lea.vmem %s7, 96
    %v1305 = vld [vmem:[%s1304] sm:$0xff]
    %v1306 = vld [vmem:[%s1304 + $0x8] sm:$0xff]
    %v1307 = vld [vmem:[%s1304 + $0x10] sm:$0xff]
    %v1308 = vld [vmem:[%s1304 + $0x18] sm:$0xff]
    %s1309 = scalar_lea.vmem %s8, 6
    %v1310 = vld [vmem:[%s1309] sm:$0x3]
    %v1312 = vlaneseq
    %v1313 = vshrl.u32 %v1312, 7
    %v1314 = vsub.s32 1, %v1313
    %v1315 = vrot.slane %v1310, %v1314
    %v1321 = vunpack.c.l.b16 %v1305
    %v1322 = vunpack.c.h.b16 %v1305
    %v1323 = vunpack.c.l.b16 %v1306
    %v1324 = vunpack.c.h.b16 %v1306
    %v1325 = vunpack.c.l.b16 %v1307
    %v1326 = vunpack.c.h.b16 %v1307
    %v1327 = vunpack.c.l.b16 %v1308
    %v1328 = vunpack.c.h.b16 %v1308
    %v1329 = vpack.c.b16 %v1323, %v1321
    %v1330 = vpack.c.b16 %v1324, %v1322
    %v1331 = vpack.c.b16 %v1327, %v1325
    %v1332 = vpack.c.b16 %v1328, %v1326
    %v1338 = vsel %vm172, %v1303, 0
    %1340 = vmatprep.subr.bf16.mxu0 %v1330
    %1341 = vmatpush1.bf16.msra.mxu0 %v1329
    %1342 = vmatprep.subr.bf16.mxu0 %v1332
    %1343 = vmatpush1.bf16.msra.mxu0 %v1331
    %1344 = vmatprep.subr.bf16.mxu0 0
    %1345 = vmatpush1.bf16.msra.mxu0 0
    %1346 = vmatprep.subr.bf16.mxu0 0
    %1347 = vmatpush1.bf16.msra.mxu0 0
    %1348 = vmatprep.subr.bf16.mxu0 0
    %1349 = vmatpush1.bf16.msra.mxu0 0
    %1350 = vmatprep.subr.bf16.mxu0 0
    %1351 = vmatpush1.bf16.msra.mxu0 0
    %1352 = vmatprep.subr.bf16.mxu0 0
    %1353 = vmatpush1.bf16.msra.mxu0 0
    %1354 = vmatprep.subr.bf16.mxu0 0
    %1355 = vmatpush1.bf16.msra.mxu0 0
    %1356 = vmatprep.subr.bf16.mxu0 0
    %1357 = vmatpush1.bf16.msra.mxu0 0
    %1358 = vmatprep.subr.bf16.mxu0 0
    %1359 = vmatpush1.bf16.msra.mxu0 0
    %1360 = vmatprep.subr.bf16.mxu0 0
    %1361 = vmatpush1.bf16.msra.mxu0 0
    %1362 = vmatprep.subr.bf16.mxu0 0
    %1363 = vmatpush1.bf16.msra.mxu0 0
    %1364 = vmatprep.subr.bf16.mxu0 0
    %1365 = vmatpush1.bf16.msra.mxu0 0
    %1366 = vmatprep.subr.bf16.mxu0 0
    %1367 = vmatpush1.bf16.msra.mxu0 0
    %1368 = vmatprep.subr.bf16.mxu0 0
    %1369 = vmatpush1.bf16.msra.mxu0 0
    %1370 = vmatprep.subr.bf16.mxu0 0
    %1371 = vmatpush1.bf16.msra.mxu0 0
    %1372 = vmatprep.mubr.bf16.mxu0 0
    %1373 = vmatmul.mubr.bf16.gmra.mrb[0].mxu0 %v1338
    %v1374 = vpop.f32.mrb[0].mxu0
    %v1375 = vpop.f32.mrb[0].mxu0
    %v1376 = vadd.f32 %v1315, %v1375
    %v1377 = vpop.f32.mrb[0].mxu0
    %v1378 = vpop.f32.mrb[0].mxu0
    %1379 = vdwg.mxu0
    %v1380 = vadd.f32 %v1047, %v1376
    %1381 = vst [vmem:[#allocation2] sm:$0xff] %v1380
    // Predicated region
    $region38: #{tpu_custom_call.1} parent=1 // pred_check
      _
    $region39: #{tpu_custom_call.1} parent=1 // pred_check_branch
      %1383 = sbr.rel (0) target = $region41
    $region40: #{tpu_custom_call.1} parent=1 // pred_region
      %s1385 = ssub.s32 128, 128
      %1386 = vsyncadd [#allocation3], %s1385
      %s1388 = sshll.u32 [#allocation2], 4
      %s1389 = int_to_ptr.vmem [resolvable:$true] %s1388
      %1391 = dma.vmem_to_hbm [thread:$0]  %s1389, 128, %s9, [#allocation3]
    $region41: #{tpu_custom_call.1} parent=1 // pred_fallthru
      _
    // Predicated region
    $region42: #{tpu_custom_call.1} parent=1 // pred_check
      _
    $region43: #{tpu_custom_call.1} parent=1 // pred_check_branch
      %1393 = sbr.rel (0) target = $region45
    $region44: #{tpu_custom_call.1} parent=1 // pred_region
      %1394 = dma.done [#allocation3], 128
    $region45: #{tpu_custom_call.1} parent=1 // pred_fallthru
      _
    %1395 = vsyncpa [#allocation3], 1

</llo_original>
